<compile_context>
chip_gen: v6e
topology: v6e:2x2x1
jax: 0.10.0
libtpu: 0.0.40
codegen_flags: <defaults>
</compile_context>

<pallas_src>
import functools
import math

import jax
import jax.numpy as jnp
from jax import lax
from jax.experimental import pallas as pl
from jax.experimental.pallas import tpu as pltpu


def _round_up(x, m):
    return (x + m - 1) // m * m


@functools.lru_cache(maxsize=None)
def _vmem_limit_bytes():
    """Scoped VMEM limit per generation: ~48 MiB on v7x (64 MiB physical),
    ~96 MiB on v5e/v6e (128 MiB physical)."""
    cap = 64 * 1024 * 1024
    try:
        cap = int(getattr(pltpu.get_tpu_info(), "vmem_capacity_bytes", cap))
    except Exception:
        pass
    return max(32 * 1024 * 1024, min(cap * 3 // 4, 100 * 1024 * 1024))


# ----------------------------------------------------------------------------
# Fused QKV projection:  x_i (B,S,Dm) -> out_i (B,H,S,d) for i in {k,(q),v}.
# One full-width (S_blk,Dm)x(Dm,Dm) MXU matmul per projection; the
# .view(B,S,H,d).transpose(1,2) of the PyTorch module is folded into the output
# BlockSpec (no XLA transpose kernels).
# ----------------------------------------------------------------------------
def _fused_proj_kernel(*refs, n_inputs, num_head, dim_feature, matmul_dtype):
    x_refs = refs[:n_inputs]
    w_ref = refs[n_inputs]          # (n, Dm, Dm) in matmul_dtype
    b_ref = refs[n_inputs + 1]      # (n, H, d)   f32
    o_refs = refs[n_inputs + 2:]    # n x (1, H, block_s, d)
    H, d = num_head, dim_feature
    for i in range(n_inputs):
        x = x_refs[i][0].astype(matmul_dtype)                     # (block_s, Dm)
        y = lax.dot_general(x, w_ref[i], (((1,), (1,)), ((), ())),
                            preferred_element_type=jnp.float32)   # (block_s, Dm)
        # TODO(synk): d < 128 head slabs use masked vst; a 2-heads-per-slab
        # layout would make these stores lane-dense.
        for h in range(H):
            o_refs[i][0, h] = (y[:, h * d:(h + 1) * d]
                               + b_ref[i, h]).astype(o_refs[i].dtype)


def fused_head_projection(xs, w_stack, b_stack, num_head, *, block_s,
                          matmul_dtype=jnp.bfloat16):
    """xs: tuple of (B,S,Dm); w_stack: (n,Dm,Dm) torch Linear weights;
    b_stack: (n,H,d).  Returns one (B,H,S,d) array (matmul_dtype) per input."""
    n = len(xs)
    assert w_stack.shape[0] == n and b_stack.shape[0] == n
    B, S, Dm = xs[0].shape
    H = num_head
    d = Dm // H
    assert S % block_s == 0
    n_s = S // block_s

    kernel = functools.partial(_fused_proj_kernel, n_inputs=n, num_head=H,
                               dim_feature=d, matmul_dtype=matmul_dtype)
    in_specs = ([pl.BlockSpec((1, block_s, Dm), lambda b, s: (b, s, 0))
                 for _ in range(n)]
                + [pl.BlockSpec((n, Dm, Dm), lambda b, s: (0, 0, 0)),
                   pl.BlockSpec((n, H, d), lambda b, s: (0, 0, 0))])
    out_specs = tuple(pl.BlockSpec((1, H, block_s, d), lambda b, s: (b, 0, s, 0))
                      for _ in range(n))
    out_shape = tuple(jax.ShapeDtypeStruct((B, H, S, d), matmul_dtype)
                      for _ in range(n))
    return pl.pallas_call(
        kernel,
        out_shape=out_shape,
        grid=(B, n_s),
        in_specs=in_specs,
        out_specs=out_specs,
        compiler_params=pltpu.CompilerParams(
            dimension_semantics=("parallel", "parallel"),
            vmem_limit_bytes=_vmem_limit_bytes()),
    )(*[x.astype(jnp.float32) for x in xs],
      w_stack.astype(matmul_dtype), b_stack.astype(jnp.float32))


# ----------------------------------------------------------------------------
# AKT attention (heads folded) + fused, deferred output projection.
#   grid = (batch, q_tile);  K/V blocks are resident per batch.
# ----------------------------------------------------------------------------
def _akt_attention_kernel(gamma_ref, tri_ref, mask_ref, q_ref, k_ref, v_ref,
                          wo_ref, bo_ref, *rest, seq_len, block_q, num_head,
                          dim_feature, key_chunk, zero_pad, use_pdiff,
                          matmul_dtype):
    if use_pdiff:
        diff_ref, o_ref = rest
    else:
        (o_ref,) = rest

    qt = pl.program_id(1)
    H, d, S, C = num_head, dim_feature, seq_len, key_chunk
    n_chunks = S // C
    neg_inf = jnp.float32(-1e32)
    scale = jnp.float32(1.0 / math.sqrt(d))

    # Head-invariant work, computed once per (batch, q_tile).
    maskf = mask_ref[0, 0].astype(jnp.float32)                       # (block_q, S)
    is_masked = maskf == 0.0
    row = lax.broadcasted_iota(jnp.int32, (block_q, S), 0) + qt * block_q
    col = lax.broadcasted_iota(jnp.int32, (block_q, S), 1)
    position_effect = jnp.abs(col - row).astype(jnp.float32)
    diff = diff_ref[0].astype(jnp.float32) if use_pdiff else None
    tri = tri_ref[...]                                               # (C, C)

    head_outs = []
    for h in range(H):                                               # static unroll
        q = q_ref[0, h].astype(matmul_dtype)                         # (block_q, d)
        k = k_ref[0, h].astype(matmul_dtype)                         # (S, d)
        scores = lax.dot_general(q, k, (((1,), (1,)), ((), ())),
                                 preferred_element_type=jnp.float32) * scale

        # --- first ("detached") softmax feeding the distance statistics ------
        m1 = jnp.where(is_masked, neg_inf, scores)
        m1 = m1 - jnp.max(m1, axis=-1, keepdims=True)
        e1 = jnp.exp(m1)
        inv1 = pl.reciprocal(jnp.sum(e1, axis=-1, keepdims=True), approx=True)
        scores_ = e1 * inv1 * maskf                                  # (block_q, S)

        # --- dist_total - dist_cumsum == suffix sum, computed blockwise ------
        suffix = jnp.zeros((block_q, 1), jnp.float32)
        pieces = [None] * n_chunks
        for c in reversed(range(n_chunks)):
            blk = scores_[:, c * C:(c + 1) * C]
            intra = jnp.dot(blk.astype(matmul_dtype), tri,
                            preferred_element_type=jnp.float32)
            pieces[c] = intra + suffix
            suffix = suffix + jnp.sum(blk, axis=-1, keepdims=True)
        dist_rem = pieces[0] if n_chunks == 1 else jnp.concatenate(pieces, -1)

        dist_scores = jnp.sqrt(jnp.maximum(dist_rem * position_effect, 0.0))
        gamma = gamma_ref[h]                                         # SMEM scalar
        decay = dist_scores * gamma
        if use_pdiff:
            decay = decay * diff
        total_effect = jnp.clip(jnp.exp(decay), 1e-5, 1e5)

        # --- second softmax over the decayed scores --------------------------
        m2 = jnp.where(is_masked, neg_inf, scores * total_effect)
        m2 = m2 - jnp.max(m2, axis=-1, keepdims=True)
        e2 = jnp.exp(m2)
        inv2 = pl.reciprocal(jnp.sum(e2, axis=-1, keepdims=True), approx=True)
        attn = e2 * inv2

        # TODO(synk): dropout omitted (module evaluated in eval mode -> identity).
        head_outs.append(jnp.dot(attn.astype(matmul_dtype), v_ref[0, h],
                                 preferred_element_type=jnp.float32))

    concat = jnp.concatenate(head_outs, axis=-1)                     # (block_q, Dm)
    if zero_pad:
        grow = lax.broadcasted_iota(jnp.int32, (block_q, 1), 0) + qt * block_q
        concat = jnp.where(grow == 0, 0.0, concat)

    # Deferred output projection: one full-depth matmul against Wo (resident).
    out = lax.dot_general(concat.astype(matmul_dtype), wo_ref[...],
                          (((1,), (1,)), ((), ())),
                          preferred_element_type=jnp.float32)
    o_ref[0] = out + bo_ref[...]


def akt_attention_out_proj(q, k, v, mask, neg_gamma, wo, bo, diff, *, zero_pad,
                           block_q, key_chunk, matmul_dtype=jnp.bfloat16):
    """q/k/v: (B,H,S,d); mask: (1|B,1,S,S); neg_gamma: (H,); wo: (Dm,Dm);
    bo: (1,Dm); diff: (B,S,S) or None.  Returns (B,S,Dm) float32."""
    B, H, S, d = q.shape
    Dm = H * d
    assert S % block_q == 0 and S % key_chunk == 0
    n_q = S // block_q
    use_pdiff = diff is not None

    idx = jnp.arange(key_chunk)
    tri = (idx[:, None] > idx[None, :]).astype(matmul_dtype)   # strict lower tri

    kernel = functools.partial(
        _akt_attention_kernel, seq_len=S, block_q=block_q, num_head=H,
        dim_feature=d, key_chunk=key_chunk, zero_pad=bool(zero_pad),
        use_pdiff=use_pdiff, matmul_dtype=matmul_dtype)

    mask_map = ((lambda b, s: (0, 0, s, 0)) if mask.shape[0] == 1
                else (lambda b, s: (b, 0, s, 0)))
    in_specs = [
        pl.BlockSpec(memory_space=pltpu.MemorySpace.SMEM),              # gamma (H,)
        pl.BlockSpec((key_chunk, key_chunk), lambda b, s: (0, 0)),      # tri
        pl.BlockSpec((1, 1, block_q, S), mask_map),                     # mask
        pl.BlockSpec((1, H, block_q, d), lambda b, s: (b, 0, s, 0)),    # q tile
        pl.BlockSpec((1, H, S, d), lambda b, s: (b, 0, 0, 0)),          # K resident
        pl.BlockSpec((1, H, S, d), lambda b, s: (b, 0, 0, 0)),          # V resident
        pl.BlockSpec((Dm, Dm), lambda b, s: (0, 0)),                    # Wo
        pl.BlockSpec((1, Dm), lambda b, s: (0, 0)),                     # bo
    ]
    args = [neg_gamma.astype(jnp.float32), tri, mask.astype(matmul_dtype),
            q, k, v, wo.astype(matmul_dtype), bo.astype(jnp.float32)]
    if use_pdiff:
        in_specs.append(pl.BlockSpec((1, block_q, S), lambda b, s: (b, s, 0)))
        args.append(diff.astype(matmul_dtype))

    return pl.pallas_call(
        kernel,
        out_shape=jax.ShapeDtypeStruct((B, S, Dm), jnp.float32),
        grid=(B, n_q),
        in_specs=in_specs,
        out_specs=pl.BlockSpec((1, block_q, Dm), lambda b, s: (b, s, 0)),
        compiler_params=pltpu.CompilerParams(
            dimension_semantics=("parallel", "parallel"),
            vmem_limit_bytes=_vmem_limit_bytes()),
    )(*args)


# ----------------------------------------------------------------------------
# Parameter setup (deterministic, mirrors the nn.Module __init__)
# ----------------------------------------------------------------------------
def _xavier_uniform(key, shape):
    if len(shape) == 2:                       # Linear weight (out, in)
        fan_out, fan_in = shape
    else:                                     # gammas (H, 1, 1) -> torch fan rules
        recept = int(jnp.prod(jnp.array(shape[2:])))
        fan_in = shape[1] * recept
        fan_out = shape[0] * recept
    bound = math.sqrt(6.0 / (fan_in + fan_out))
    return jax.random.uniform(key, shape, jnp.float32, -bound, bound)


class MultiHeadAttention4AKTPallas:
    def __init__(self, dim_model, num_head, key_query_same, key, bias=True,
                 matmul_dtype=jnp.bfloat16):
        assert dim_model % num_head == 0
        self.dim_model = dim_model
        self.num_head = num_head
        self.dim_feature = dim_model // num_head
        self.key_query_same = key_query_same
        self.matmul_dtype = matmul_dtype      # bf16 MXU inputs, f32 accumulation

        ks = jax.random.split(key, 5)
        self.Wk = _xavier_uniform(ks[0], (dim_model, dim_model))
        self.Wv = _xavier_uniform(ks[1], (dim_model, dim_model))
        self.Wo = _xavier_uniform(ks[2], (dim_model, dim_model))
        self.bk = jnp.zeros((dim_model,), jnp.float32)
        self.bv = jnp.zeros((dim_model,), jnp.float32)
        self.bo = jnp.zeros((dim_model,), jnp.float32)
        if key_query_same:
            self.Wq, self.bq = self.Wk, self.bk
        else:
            self.Wq = _xavier_uniform(ks[3], (dim_model, dim_model))
            self.bq = jnp.zeros((dim_model,), jnp.float32)
        self.gammas = _xavier_uniform(ks[4], (num_head, 1, 1))

        H, d = num_head, self.dim_feature
        # One-time packing of the projection weights (pre-cast to the MXU dtype).
        self.W_kqv = jnp.stack([self.Wk, self.Wq, self.Wv]).astype(matmul_dtype)
        self.b_kqv = jnp.stack([self.bk, self.bq, self.bv]).reshape(3, H, d)
        self.W_kv = jnp.stack([self.Wk, self.Wv]).astype(matmul_dtype)
        self.b_kv = jnp.stack([self.bk, self.bv]).reshape(2, H, d)
        self.Wo_mm = self.Wo.astype(matmul_dtype)

    def __call__(self, q, k, v, mask, zero_pad, question_difficulty_emb):
        B, S, Dm = q.shape
        H = self.num_head
        dt = self.matmul_dtype
        same_q = self.key_query_same and (q is k)
        pdiff = question_difficulty_emb

        # Pad S to the tiling unit instead of a full-extent fallback block.
        Sp = S if S <= 256 else _round_up(S, 256)
        pad = Sp - S
        if pad:
            k = jnp.pad(k, ((0, 0), (0, pad), (0, 0)))
            v = jnp.pad(v, ((0, 0), (0, pad), (0, 0)))
            q = k if same_q else jnp.pad(q, ((0, 0), (0, pad), (0, 0)))
            mask = jnp.pad(mask, ((0, 0), (0, 0), (0, pad), (0, pad)))
            if pdiff is not None:
                pdiff = jnp.pad(pdiff, ((0, 0), (0, pad), (0, pad)))

        proj_block = Sp if Sp <= 512 else (512 if Sp % 512 == 0 else 256)
        attn_block = Sp if Sp <= 256 else (128 if Sp >= 2048 else 256)
        key_chunk = Sp if Sp <= 256 else 256

        if same_q:   # shared-weight self-attention: skip the redundant Q projection
            k_p, v_p = fused_head_projection((k, v), self.W_kv, self.b_kv, H,
                                             block_s=proj_block, matmul_dtype=dt)
            q_p = k_p
        else:
            k_p, q_p, v_p = fused_head_projection(
                (k, q, v), self.W_kqv, self.b_kqv, H,
                block_s=proj_block, matmul_dtype=dt)

        neg_gamma = (-jax.nn.softplus(self.gammas)).reshape(H).astype(jnp.float32)
        # Head-invariant transcendental work hoisted out of the kernel; values
        # lie in [1, e] so shipping it in the MXU dtype is numerically safe.
        diff = None if pdiff is None else jnp.exp(
            jax.nn.sigmoid(pdiff.astype(jnp.float32)))

        out = akt_attention_out_proj(
            q_p, k_p, v_p, mask, neg_gamma, self.Wo_mm,
            self.bo.reshape(1, self.dim_model), diff, zero_pad=zero_pad,
            block_q=attn_block, key_chunk=key_chunk, matmul_dtype=dt)
        return out[:, :S] if pad else out


# ----------------------------------------------------------------------------
# Pure-JAX reference (mirrors the PyTorch code) for correctness checks
# ----------------------------------------------------------------------------
def reference_forward(m, q, k, v, mask, zero_pad, pdiff):
    HI = lax.Precision.HIGHEST
    B, S, Dm = q.shape
    H, d = m.num_head, m.dim_feature

    def lin(x, W, b):
        return jnp.einsum('bsd,ed->bse', x, W, precision=HI) + b

    kk = lin(k, m.Wk, m.bk).reshape(B, S, H, d).transpose(0, 2, 1, 3)
    qq = lin(q, m.Wq, m.bq).reshape(B, S, H, d).transpose(0, 2, 1, 3)
    vv = lin(v, m.Wv, m.bv).reshape(B, S, H, d).transpose(0, 2, 1, 3)

    scores = jnp.einsum('bhqd,bhkd->bhqk', qq, kk, precision=HI) / math.sqrt(d)
    x1 = jnp.arange(S)[None, :]
    x2 = jnp.arange(S)[:, None]
    scores_ = jnp.where(mask == 0, -1e32, scores)
    scores_ = jax.nn.softmax(scores_, axis=-1) * mask
    dist_cum = jnp.cumsum(scores_, axis=-1)
    dist_tot = jnp.sum(scores_, axis=-1, keepdims=True)
    pos = jnp.abs(x1 - x2)[None, None].astype(jnp.float32)
    dist_scores = jnp.sqrt(jnp.maximum((dist_tot - dist_cum) * pos, 0.0))
    gamma = (-jax.nn.softplus(m.gammas))[None]              # (1,H,1,1)
    if pdiff is None:
        total_effect = jnp.clip(jnp.exp(dist_scores * gamma), 1e-5, 1e5)
    else:
        diff = jnp.exp(jax.nn.sigmoid(pdiff))[:, None]      # (B,1,S,S)
        total_effect = jnp.clip(jnp.exp(dist_scores * gamma * diff), 1e-5, 1e5)
    scores = scores * total_effect
    scores = jnp.where(mask == 0, -1e32, scores)
    scores = jax.nn.softmax(scores, axis=-1)
    if zero_pad:
        scores = scores.at[:, :, 0, :].set(0.0)
    out = jnp.einsum('bhqk,bhkd->bhqd', scores, vv, precision=HI)
    concat = out.transpose(0, 2, 1, 3).reshape(B, S, Dm)
    return jnp.einsum('bsd,ed->bse', concat, m.Wo, precision=HI) + m.bo


# ----------------------------------------------------------------------------
if __name__ == "__main__":
    key = jax.random.PRNGKey(0)
    k_params, kq, kk, kv, kp = jax.random.split(key, 5)

    B, S, Dm, H = 2, 8, 32, 4   # batch, seq, dim_model, num_head

    q = jax.random.normal(kq, (B, S, Dm), jnp.float32)
    k = jax.random.normal(kk, (B, S, Dm), jnp.float32)
    v = jax.random.normal(kv, (B, S, Dm), jnp.float32)
    # strictly-lower-triangular causal mask (row 0 fully masked -> zero_pad=True)
    mask = jnp.tril(jnp.ones((S, S), jnp.float32), k=-1)[None, None]
    pdiff = 0.1 * jax.random.normal(kp, (B, S, S), jnp.float32)

    def check(name, out, ref, atol, rtol):
        out = jax.block_until_ready(out)
        if not jnp.allclose(out, ref, atol=atol, rtol=rtol):
            err = float(jnp.max(jnp.abs(out - ref)))
            raise AssertionError(f"{name} mismatch, max_err={err}")

    # f32-MXU model: tight checks of the kernel logic against the reference.
    model_f32 = MultiHeadAttention4AKTPallas(Dm, H, key_query_same=True,
                                             key=k_params,
                                             matmul_dtype=jnp.float32)
    check("f32 pdiff", model_f32(q, k, v, mask, True, pdiff),
          reference_forward(model_f32, q, k, v, mask, True, pdiff), 2e-2, 2e-2)
    check("f32 no-pdiff", model_f32(q, k, v, mask, True, None),
          reference_forward(model_f32, q, k, v, mask, True, None), 2e-2, 2e-2)
    # q is k: exercises the fused 2-projection (skip-Q) path.
    check("f32 q-is-k", model_f32(k, k, v, mask, True, None),
          reference_forward(model_f32, k, k, v, mask, True, None), 2e-2, 2e-2)

    # Non-multiple-of-8 sequence: exercises padding, q-tiling, the blocked
    # suffix-sum over key chunks, and K/V residency across q tiles.
    B2, S2, Dm2, H2 = 1, 300, 16, 2
    kq2, kk2, kv2, kp2, kparams2 = jax.random.split(jax.random.PRNGKey(1), 5)
    q2 = jax.random.normal(kq2, (B2, S2, Dm2), jnp.float32)
    k2 = jax.random.normal(kk2, (B2, S2, Dm2), jnp.float32)
    v2 = jax.random.normal(kv2, (B2, S2, Dm2), jnp.float32)
    mask2 = jnp.tril(jnp.ones((S2, S2), jnp.float32), k=-1)[None, None]
    pdiff2 = 0.1 * jax.random.normal(kp2, (B2, S2, S2), jnp.float32)
    model2 = MultiHeadAttention4AKTPallas(Dm2, H2, key_query_same=False,
                                          key=kparams2, matmul_dtype=jnp.float32)
    check("f32 padded", model2(q2, k2, v2, mask2, True, pdiff2),
          reference_forward(model2, q2, k2, v2, mask2, True, pdiff2), 2e-2, 2e-2)

    # Default bf16-MXU model (f32 accumulation / f32 softmax statistics).
    model_bf16 = MultiHeadAttention4AKTPallas(Dm, H, key_query_same=True,
                                              key=k_params)
    out_bf = jax.block_until_ready(model_bf16(q, k, v, mask, True, pdiff))
    ref_bf = reference_forward(model_bf16, q, k, v, mask, True, pdiff)
    if not (bool(jnp.all(jnp.isfinite(out_bf)))
            and jnp.allclose(out_bf, ref_bf, atol=0.25, rtol=0.25)):
        raise AssertionError("bf16 path mismatch")

    print("KERNEL_OK")
</pallas_src>

<mosaic_0001>
module attributes {stable_mosaic.version = 11 : i64} {
  func.func @_fused_proj_kernel(%arg0: i32, %arg1: i32, %arg2: memref<1x8x32xf32, #tpu.memory_space<vmem>>, %arg3: memref<1x8x32xf32, #tpu.memory_space<vmem>>, %arg4: memref<1x8x32xf32, #tpu.memory_space<vmem>>, %arg5: memref<3x32x32xf32, #tpu.memory_space<vmem>>, %arg6: memref<3x4x8xf32, #tpu.memory_space<vmem>>, %arg7: memref<1x4x8x8xf32, #tpu.memory_space<vmem>>, %arg8: memref<1x4x8x8xf32, #tpu.memory_space<vmem>>, %arg9: memref<1x4x8x8xf32, #tpu.memory_space<vmem>>) attributes {dimension_semantics = [#tpu.dimension_semantics<parallel>, #tpu.dimension_semantics<parallel>], iteration_bounds = array<i64: 2, 1>, scalar_prefetch = 0 : i64, scratch_operands = 0 : i64, tpu.core_type = #tpu.core_type<tc>, window_params = [{transform_indices = @transform_0, window_bounds = array<i64: 1, 8, 32>}, {transform_indices = @transform_1, window_bounds = array<i64: 1, 8, 32>}, {transform_indices = @transform_2, window_bounds = array<i64: 1, 8, 32>}, {pipeline_mode = #tpu.pipeline_mode<synchronous>, transform_indices = @transform_3, window_bounds = array<i64: 3, 32, 32>}, {pipeline_mode = #tpu.pipeline_mode<synchronous>, transform_indices = @transform_4, window_bounds = array<i64: 3, 4, 8>}, {transform_indices = @transform_5, window_bounds = array<i64: 1, 4, 8, 8>}, {transform_indices = @transform_6, window_bounds = array<i64: 1, 4, 8, 8>}, {transform_indices = @transform_7, window_bounds = array<i64: 1, 4, 8, 8>}]} {
    %c0 = arith.constant 0 : index
    %c0_0 = arith.constant 0 : index
    %c0_1 = arith.constant 0 : index
    %0 = vector.load %arg2[%c0, %c0_0, %c0_1] : memref<1x8x32xf32, #tpu.memory_space<vmem>>, vector<1x8x32xf32>
    %1 = vector.shape_cast %0 : vector<1x8x32xf32> to vector<8x32xf32>
    %c0_2 = arith.constant 0 : index
    %c0_3 = arith.constant 0 : index
    %c0_4 = arith.constant 0 : index
    %2 = vector.load %arg5[%c0_2, %c0_3, %c0_4] : memref<3x32x32xf32, #tpu.memory_space<vmem>>, vector<1x32x32xf32>
    %3 = vector.shape_cast %2 : vector<1x32x32xf32> to vector<32x32xf32>
    %cst = arith.constant dense<0.000000e+00> : vector<8x32xf32>
    %4 = tpu.matmul %1, %3, %cst {dimension_numbers = #tpu.dot_dimension_numbers<[1], [1], [0], [0], [0, 0, 1, 0], [], []>} : vector<8x32xf32>, vector<32x32xf32>, vector<8x32xf32> -> vector<8x32xf32>
    %5 = vector.extract_strided_slice %4 {offsets = [0, 0], sizes = [8, 8], strides = [1, 1]} : vector<8x32xf32> to vector<8x8xf32>
    %c0_5 = arith.constant 0 : index
    %c0_6 = arith.constant 0 : index
    %c0_7 = arith.constant 0 : index
    %6 = vector.load %arg6[%c0_5, %c0_6, %c0_7] : memref<3x4x8xf32, #tpu.memory_space<vmem>>, vector<1x1x8xf32>
    %7 = vector.shape_cast %6 : vector<1x1x8xf32> to vector<8xf32>
    %8 = vector.shape_cast %7 : vector<8xf32> to vector<1x8xf32>
    %9 = vector.broadcast %8 : vector<1x8xf32> to vector<8x8xf32>
    %10 = arith.addf %5, %9 : vector<8x8xf32>
    %c0_8 = arith.constant 0 : index
    %c0_9 = arith.constant 0 : index
    %c0_10 = arith.constant 0 : index
    %c0_11 = arith.constant 0 : index
    %11 = vector.load %arg7[%c0_8, %c0_9, %c0_10, %c0_11] : memref<1x4x8x8xf32, #tpu.memory_space<vmem>>, vector<1x1x8x8xf32>
    %12 = vector.shape_cast %11 : vector<1x1x8x8xf32> to vector<8x8xf32>
    %13 = vector.shape_cast %10 : vector<8x8xf32> to vector<1x1x8x8xf32>
    tpu.vector_store %arg7[%c0_8, %c0_9, %c0_10, %c0_11], %13 {strides = array<i32>} : memref<1x4x8x8xf32, #tpu.memory_space<vmem>>, vector<1x1x8x8xf32>,
    %14 = vector.extract_strided_slice %4 {offsets = [0, 8], sizes = [8, 8], strides = [1, 1]} : vector<8x32xf32> to vector<8x8xf32>
    %c0_12 = arith.constant 0 : index
    %c1 = arith.constant 1 : index
    %c0_13 = arith.constant 0 : index
    %15 = vector.load %arg6[%c0_12, %c1, %c0_13] : memref<3x4x8xf32, #tpu.memory_space<vmem>>, vector<1x1x8xf32>
    %16 = vector.shape_cast %15 : vector<1x1x8xf32> to vector<8xf32>
    %17 = vector.shape_cast %16 : vector<8xf32> to vector<1x8xf32>
    %18 = vector.broadcast %17 : vector<1x8xf32> to vector<8x8xf32>
    %19 = arith.addf %14, %18 : vector<8x8xf32>
    %c0_14 = arith.constant 0 : index
    %c1_15 = arith.constant 1 : index
    %c0_16 = arith.constant 0 : index
    %c0_17 = arith.constant 0 : index
    %20 = vector.load %arg7[%c0_14, %c1_15, %c0_16, %c0_17] : memref<1x4x8x8xf32, #tpu.memory_space<vmem>>, vector<1x1x8x8xf32>
    %21 = vector.shape_cast %20 : vector<1x1x8x8xf32> to vector<8x8xf32>
    %22 = vector.shape_cast %19 : vector<8x8xf32> to vector<1x1x8x8xf32>
    tpu.vector_store %arg7[%c0_14, %c1_15, %c0_16, %c0_17], %22 {strides = array<i32>} : memref<1x4x8x8xf32, #tpu.memory_space<vmem>>, vector<1x1x8x8xf32>,
    %23 = vector.extract_strided_slice %4 {offsets = [0, 16], sizes = [8, 8], strides = [1, 1]} : vector<8x32xf32> to vector<8x8xf32>
    %c0_18 = arith.constant 0 : index
    %c2 = arith.constant 2 : index
    %c0_19 = arith.constant 0 : index
    %24 = vector.load %arg6[%c0_18, %c2, %c0_19] : memref<3x4x8xf32, #tpu.memory_space<vmem>>, vector<1x1x8xf32>
    %25 = vector.shape_cast %24 : vector<1x1x8xf32> to vector<8xf32>
    %26 = vector.shape_cast %25 : vector<8xf32> to vector<1x8xf32>
    %27 = vector.broadcast %26 : vector<1x8xf32> to vector<8x8xf32>
    %28 = arith.addf %23, %27 : vector<8x8xf32>
    %c0_20 = arith.constant 0 : index
    %c2_21 = arith.constant 2 : index
    %c0_22 = arith.constant 0 : index
    %c0_23 = arith.constant 0 : index
    %29 = vector.load %arg7[%c0_20, %c2_21, %c0_22, %c0_23] : memref<1x4x8x8xf32, #tpu.memory_space<vmem>>, vector<1x1x8x8xf32>
    %30 = vector.shape_cast %29 : vector<1x1x8x8xf32> to vector<8x8xf32>
    %31 = vector.shape_cast %28 : vector<8x8xf32> to vector<1x1x8x8xf32>
    tpu.vector_store %arg7[%c0_20, %c2_21, %c0_22, %c0_23], %31 {strides = array<i32>} : memref<1x4x8x8xf32, #tpu.memory_space<vmem>>, vector<1x1x8x8xf32>,
    %32 = vector.extract_strided_slice %4 {offsets = [0, 24], sizes = [8, 8], strides = [1, 1]} : vector<8x32xf32> to vector<8x8xf32>
    %c0_24 = arith.constant 0 : index
    %c3 = arith.constant 3 : index
    %c0_25 = arith.constant 0 : index
    %33 = vector.load %arg6[%c0_24, %c3, %c0_25] : memref<3x4x8xf32, #tpu.memory_space<vmem>>, vector<1x1x8xf32>
    %34 = vector.shape_cast %33 : vector<1x1x8xf32> to vector<8xf32>
    %35 = vector.shape_cast %34 : vector<8xf32> to vector<1x8xf32>
    %36 = vector.broadcast %35 : vector<1x8xf32> to vector<8x8xf32>
    %37 = arith.addf %32, %36 : vector<8x8xf32>
    %c0_26 = arith.constant 0 : index
    %c3_27 = arith.constant 3 : index
    %c0_28 = arith.constant 0 : index
    %c0_29 = arith.constant 0 : index
    %38 = vector.load %arg7[%c0_26, %c3_27, %c0_28, %c0_29] : memref<1x4x8x8xf32, #tpu.memory_space<vmem>>, vector<1x1x8x8xf32>
    %39 = vector.shape_cast %38 : vector<1x1x8x8xf32> to vector<8x8xf32>
    %40 = vector.shape_cast %37 : vector<8x8xf32> to vector<1x1x8x8xf32>
    tpu.vector_store %arg7[%c0_26, %c3_27, %c0_28, %c0_29], %40 {strides = array<i32>} : memref<1x4x8x8xf32, #tpu.memory_space<vmem>>, vector<1x1x8x8xf32>,
    %c0_30 = arith.constant 0 : index
    %c0_31 = arith.constant 0 : index
    %c0_32 = arith.constant 0 : index
    %41 = vector.load %arg3[%c0_30, %c0_31, %c0_32] : memref<1x8x32xf32, #tpu.memory_space<vmem>>, vector<1x8x32xf32>
    %42 = vector.shape_cast %41 : vector<1x8x32xf32> to vector<8x32xf32>
    %c1_33 = arith.constant 1 : index
    %c0_34 = arith.constant 0 : index
    %c0_35 = arith.constant 0 : index
    %43 = vector.load %arg5[%c1_33, %c0_34, %c0_35] : memref<3x32x32xf32, #tpu.memory_space<vmem>>, vector<1x32x32xf32>
    %44 = vector.shape_cast %43 : vector<1x32x32xf32> to vector<32x32xf32>
    %cst_36 = arith.constant dense<0.000000e+00> : vector<8x32xf32>
    %45 = tpu.matmul %42, %44, %cst_36 {dimension_numbers = #tpu.dot_dimension_numbers<[1], [1], [0], [0], [0, 0, 1, 0], [], []>} : vector<8x32xf32>, vector<32x32xf32>, vector<8x32xf32> -> vector<8x32xf32>
    %46 = vector.extract_strided_slice %45 {offsets = [0, 0], sizes = [8, 8], strides = [1, 1]} : vector<8x32xf32> to vector<8x8xf32>
    %c1_37 = arith.constant 1 : index
    %c0_38 = arith.constant 0 : index
    %c0_39 = arith.constant 0 : index
    %47 = vector.load %arg6[%c1_37, %c0_38, %c0_39] : memref<3x4x8xf32, #tpu.memory_space<vmem>>, vector<1x1x8xf32>
    %48 = vector.shape_cast %47 : vector<1x1x8xf32> to vector<8xf32>
    %49 = vector.shape_cast %48 : vector<8xf32> to vector<1x8xf32>
    %50 = vector.broadcast %49 : vector<1x8xf32> to vector<8x8xf32>
    %51 = arith.addf %46, %50 : vector<8x8xf32>
    %c0_40 = arith.constant 0 : index
    %c0_41 = arith.constant 0 : index
    %c0_42 = arith.constant 0 : index
    %c0_43 = arith.constant 0 : index
    %52 = vector.load %arg8[%c0_40, %c0_41, %c0_42, %c0_43] : memref<1x4x8x8xf32, #tpu.memory_space<vmem>>, vector<1x1x8x8xf32>
    %53 = vector.shape_cast %52 : vector<1x1x8x8xf32> to vector<8x8xf32>
    %54 = vector.shape_cast %51 : vector<8x8xf32> to vector<1x1x8x8xf32>
    tpu.vector_store %arg8[%c0_40, %c0_41, %c0_42, %c0_43], %54 {strides = array<i32>} : memref<1x4x8x8xf32, #tpu.memory_space<vmem>>, vector<1x1x8x8xf32>,
    %55 = vector.extract_strided_slice %45 {offsets = [0, 8], sizes = [8, 8], strides = [1, 1]} : vector<8x32xf32> to vector<8x8xf32>
    %c1_44 = arith.constant 1 : index
    %c1_45 = arith.constant 1 : index
    %c0_46 = arith.constant 0 : index
    %56 = vector.load %arg6[%c1_44, %c1_45, %c0_46] : memref<3x4x8xf32, #tpu.memory_space<vmem>>, vector<1x1x8xf32>
    %57 = vector.shape_cast %56 : vector<1x1x8xf32> to vector<8xf32>
    %58 = vector.shape_cast %57 : vector<8xf32> to vector<1x8xf32>
    %59 = vector.broadcast %58 : vector<1x8xf32> to vector<8x8xf32>
    %60 = arith.addf %55, %59 : vector<8x8xf32>
    %c0_47 = arith.constant 0 : index
    %c1_48 = arith.constant 1 : index
    %c0_49 = arith.constant 0 : index
    %c0_50 = arith.constant 0 : index
    %61 = vector.load %arg8[%c0_47, %c1_48, %c0_49, %c0_50] : memref<1x4x8x8xf32, #tpu.memory_space<vmem>>, vector<1x1x8x8xf32>
    %62 = vector.shape_cast %61 : vector<1x1x8x8xf32> to vector<8x8xf32>
    %63 = vector.shape_cast %60 : vector<8x8xf32> to vector<1x1x8x8xf32>
    tpu.vector_store %arg8[%c0_47, %c1_48, %c0_49, %c0_50], %63 {strides = array<i32>} : memref<1x4x8x8xf32, #tpu.memory_space<vmem>>, vector<1x1x8x8xf32>,
    %64 = vector.extract_strided_slice %45 {offsets = [0, 16], sizes = [8, 8], strides = [1, 1]} : vector<8x32xf32> to vector<8x8xf32>
    %c1_51 = arith.constant 1 : index
    %c2_52 = arith.constant 2 : index
    %c0_53 = arith.constant 0 : index
    %65 = vector.load %arg6[%c1_51, %c2_52, %c0_53] : memref<3x4x8xf32, #tpu.memory_space<vmem>>, vector<1x1x8xf32>
    %66 = vector.shape_cast %65 : vector<1x1x8xf32> to vector<8xf32>
    %67 = vector.shape_cast %66 : vector<8xf32> to vector<1x8xf32>
    %68 = vector.broadcast %67 : vector<1x8xf32> to vector<8x8xf32>
    %69 = arith.addf %64, %68 : vector<8x8xf32>
    %c0_54 = arith.constant 0 : index
    %c2_55 = arith.constant 2 : index
    %c0_56 = arith.constant 0 : index
    %c0_57 = arith.constant 0 : index
    %70 = vector.load %arg8[%c0_54, %c2_55, %c0_56, %c0_57] : memref<1x4x8x8xf32, #tpu.memory_space<vmem>>, vector<1x1x8x8xf32>
    %71 = vector.shape_cast %70 : vector<1x1x8x8xf32> to vector<8x8xf32>
    %72 = vector.shape_cast %69 : vector<8x8xf32> to vector<1x1x8x8xf32>
    tpu.vector_store %arg8[%c0_54, %c2_55, %c0_56, %c0_57], %72 {strides = array<i32>} : memref<1x4x8x8xf32, #tpu.memory_space<vmem>>, vector<1x1x8x8xf32>,
    %73 = vector.extract_strided_slice %45 {offsets = [0, 24], sizes = [8, 8], strides = [1, 1]} : vector<8x32xf32> to vector<8x8xf32>
    %c1_58 = arith.constant 1 : index
    %c3_59 = arith.constant 3 : index
    %c0_60 = arith.constant 0 : index
    %74 = vector.load %arg6[%c1_58, %c3_59, %c0_60] : memref<3x4x8xf32, #tpu.memory_space<vmem>>, vector<1x1x8xf32>
    %75 = vector.shape_cast %74 : vector<1x1x8xf32> to vector<8xf32>
    %76 = vector.shape_cast %75 : vector<8xf32> to vector<1x8xf32>
    %77 = vector.broadcast %76 : vector<1x8xf32> to vector<8x8xf32>
    %78 = arith.addf %73, %77 : vector<8x8xf32>
    %c0_61 = arith.constant 0 : index
    %c3_62 = arith.constant 3 : index
    %c0_63 = arith.constant 0 : index
    %c0_64 = arith.constant 0 : index
    %79 = vector.load %arg8[%c0_61, %c3_62, %c0_63, %c0_64] : memref<1x4x8x8xf32, #tpu.memory_space<vmem>>, vector<1x1x8x8xf32>
    %80 = vector.shape_cast %79 : vector<1x1x8x8xf32> to vector<8x8xf32>
    %81 = vector.shape_cast %78 : vector<8x8xf32> to vector<1x1x8x8xf32>
    tpu.vector_store %arg8[%c0_61, %c3_62, %c0_63, %c0_64], %81 {strides = array<i32>} : memref<1x4x8x8xf32, #tpu.memory_space<vmem>>, vector<1x1x8x8xf32>,
    %c0_65 = arith.constant 0 : index
    %c0_66 = arith.constant 0 : index
    %c0_67 = arith.constant 0 : index
    %82 = vector.load %arg4[%c0_65, %c0_66, %c0_67] : memref<1x8x32xf32, #tpu.memory_space<vmem>>, vector<1x8x32xf32>
    %83 = vector.shape_cast %82 : vector<1x8x32xf32> to vector<8x32xf32>
    %c2_68 = arith.constant 2 : index
    %c0_69 = arith.constant 0 : index
    %c0_70 = arith.constant 0 : index
    %84 = vector.load %arg5[%c2_68, %c0_69, %c0_70] : memref<3x32x32xf32, #tpu.memory_space<vmem>>, vector<1x32x32xf32>
    %85 = vector.shape_cast %84 : vector<1x32x32xf32> to vector<32x32xf32>
    %cst_71 = arith.constant dense<0.000000e+00> : vector<8x32xf32>
    %86 = tpu.matmul %83, %85, %cst_71 {dimension_numbers = #tpu.dot_dimension_numbers<[1], [1], [0], [0], [0, 0, 1, 0], [], []>} : vector<8x32xf32>, vector<32x32xf32>, vector<8x32xf32> -> vector<8x32xf32>
    %87 = vector.extract_strided_slice %86 {offsets = [0, 0], sizes = [8, 8], strides = [1, 1]} : vector<8x32xf32> to vector<8x8xf32>
    %c2_72 = arith.constant 2 : index
    %c0_73 = arith.constant 0 : index
    %c0_74 = arith.constant 0 : index
    %88 = vector.load %arg6[%c2_72, %c0_73, %c0_74] : memref<3x4x8xf32, #tpu.memory_space<vmem>>, vector<1x1x8xf32>
    %89 = vector.shape_cast %88 : vector<1x1x8xf32> to vector<8xf32>
    %90 = vector.shape_cast %89 : vector<8xf32> to vector<1x8xf32>
    %91 = vector.broadcast %90 : vector<1x8xf32> to vector<8x8xf32>
    %92 = arith.addf %87, %91 : vector<8x8xf32>
    %c0_75 = arith.constant 0 : index
    %c0_76 = arith.constant 0 : index
    %c0_77 = arith.constant 0 : index
    %c0_78 = arith.constant 0 : index
    %93 = vector.load %arg9[%c0_75, %c0_76, %c0_77, %c0_78] : memref<1x4x8x8xf32, #tpu.memory_space<vmem>>, vector<1x1x8x8xf32>
    %94 = vector.shape_cast %93 : vector<1x1x8x8xf32> to vector<8x8xf32>
    %95 = vector.shape_cast %92 : vector<8x8xf32> to vector<1x1x8x8xf32>
    tpu.vector_store %arg9[%c0_75, %c0_76, %c0_77, %c0_78], %95 {strides = array<i32>} : memref<1x4x8x8xf32, #tpu.memory_space<vmem>>, vector<1x1x8x8xf32>,
    %96 = vector.extract_strided_slice %86 {offsets = [0, 8], sizes = [8, 8], strides = [1, 1]} : vector<8x32xf32> to vector<8x8xf32>
    %c2_79 = arith.constant 2 : index
    %c1_80 = arith.constant 1 : index
    %c0_81 = arith.constant 0 : index
    %97 = vector.load %arg6[%c2_79, %c1_80, %c0_81] : memref<3x4x8xf32, #tpu.memory_space<vmem>>, vector<1x1x8xf32>
    %98 = vector.shape_cast %97 : vector<1x1x8xf32> to vector<8xf32>
    %99 = vector.shape_cast %98 : vector<8xf32> to vector<1x8xf32>
    %100 = vector.broadcast %99 : vector<1x8xf32> to vector<8x8xf32>
    %101 = arith.addf %96, %100 : vector<8x8xf32>
    %c0_82 = arith.constant 0 : index
    %c1_83 = arith.constant 1 : index
    %c0_84 = arith.constant 0 : index
    %c0_85 = arith.constant 0 : index
    %102 = vector.load %arg9[%c0_82, %c1_83, %c0_84, %c0_85] : memref<1x4x8x8xf32, #tpu.memory_space<vmem>>, vector<1x1x8x8xf32>
    %103 = vector.shape_cast %102 : vector<1x1x8x8xf32> to vector<8x8xf32>
    %104 = vector.shape_cast %101 : vector<8x8xf32> to vector<1x1x8x8xf32>
    tpu.vector_store %arg9[%c0_82, %c1_83, %c0_84, %c0_85], %104 {strides = array<i32>} : memref<1x4x8x8xf32, #tpu.memory_space<vmem>>, vector<1x1x8x8xf32>,
    %105 = vector.extract_strided_slice %86 {offsets = [0, 16], sizes = [8, 8], strides = [1, 1]} : vector<8x32xf32> to vector<8x8xf32>
    %c2_86 = arith.constant 2 : index
    %c2_87 = arith.constant 2 : index
    %c0_88 = arith.constant 0 : index
    %106 = vector.load %arg6[%c2_86, %c2_87, %c0_88] : memref<3x4x8xf32, #tpu.memory_space<vmem>>, vector<1x1x8xf32>
    %107 = vector.shape_cast %106 : vector<1x1x8xf32> to vector<8xf32>
    %108 = vector.shape_cast %107 : vector<8xf32> to vector<1x8xf32>
    %109 = vector.broadcast %108 : vector<1x8xf32> to vector<8x8xf32>
    %110 = arith.addf %105, %109 : vector<8x8xf32>
    %c0_89 = arith.constant 0 : index
    %c2_90 = arith.constant 2 : index
    %c0_91 = arith.constant 0 : index
    %c0_92 = arith.constant 0 : index
    %111 = vector.load %arg9[%c0_89, %c2_90, %c0_91, %c0_92] : memref<1x4x8x8xf32, #tpu.memory_space<vmem>>, vector<1x1x8x8xf32>
    %112 = vector.shape_cast %111 : vector<1x1x8x8xf32> to vector<8x8xf32>
    %113 = vector.shape_cast %110 : vector<8x8xf32> to vector<1x1x8x8xf32>
    tpu.vector_store %arg9[%c0_89, %c2_90, %c0_91, %c0_92], %113 {strides = array<i32>} : memref<1x4x8x8xf32, #tpu.memory_space<vmem>>, vector<1x1x8x8xf32>,
    %114 = vector.extract_strided_slice %86 {offsets = [0, 24], sizes = [8, 8], strides = [1, 1]} : vector<8x32xf32> to vector<8x8xf32>
    %c2_93 = arith.constant 2 : index
    %c3_94 = arith.constant 3 : index
    %c0_95 = arith.constant 0 : index
    %115 = vector.load %arg6[%c2_93, %c3_94, %c0_95] : memref<3x4x8xf32, #tpu.memory_space<vmem>>, vector<1x1x8xf32>
    %116 = vector.shape_cast %115 : vector<1x1x8xf32> to vector<8xf32>
    %117 = vector.shape_cast %116 : vector<8xf32> to vector<1x8xf32>
    %118 = vector.broadcast %117 : vector<1x8xf32> to vector<8x8xf32>
    %119 = arith.addf %114, %118 : vector<8x8xf32>
    %c0_96 = arith.constant 0 : index
    %c3_97 = arith.constant 3 : index
    %c0_98 = arith.constant 0 : index
    %c0_99 = arith.constant 0 : index
    %120 = vector.load %arg9[%c0_96, %c3_97, %c0_98, %c0_99] : memref<1x4x8x8xf32, #tpu.memory_space<vmem>>, vector<1x1x8x8xf32>
    %121 = vector.shape_cast %120 : vector<1x1x8x8xf32> to vector<8x8xf32>
    %122 = vector.shape_cast %119 : vector<8x8xf32> to vector<1x1x8x8xf32>
    tpu.vector_store %arg9[%c0_96, %c3_97, %c0_98, %c0_99], %122 {strides = array<i32>} : memref<1x4x8x8xf32, #tpu.memory_space<vmem>>, vector<1x1x8x8xf32>,
    return
  }
  func.func @transform_0(%arg0: i32, %arg1: i32) -> (i32, i32, i32) {
    %c0_i32 = arith.constant 0 : i32
    %c0_i32_0 = arith.constant 0 : i32
    return %arg0, %arg1, %c0_i32 : i32, i32, i32
  }
  func.func @transform_1(%arg0: i32, %arg1: i32) -> (i32, i32, i32) {
    %c0_i32 = arith.constant 0 : i32
    %c0_i32_0 = arith.constant 0 : i32
    return %arg0, %arg1, %c0_i32 : i32, i32, i32
  }
  func.func @transform_2(%arg0: i32, %arg1: i32) -> (i32, i32, i32) {
    %c0_i32 = arith.constant 0 : i32
    %c0_i32_0 = arith.constant 0 : i32
    return %arg0, %arg1, %c0_i32 : i32, i32, i32
  }
  func.func @transform_3(%arg0: i32, %arg1: i32) -> (i32, i32, i32) {
    %c0_i32 = arith.constant 0 : i32
    %c0_i32_0 = arith.constant 0 : i32
    %c0_i32_1 = arith.constant 0 : i32
    %c0_i32_2 = arith.constant 0 : i32
    return %c0_i32, %c0_i32_0, %c0_i32_1 : i32, i32, i32
  }
  func.func @transform_4(%arg0: i32, %arg1: i32) -> (i32, i32, i32) {
    %c0_i32 = arith.constant 0 : i32
    %c0_i32_0 = arith.constant 0 : i32
    %c0_i32_1 = arith.constant 0 : i32
    %c0_i32_2 = arith.constant 0 : i32
    return %c0_i32, %c0_i32_0, %c0_i32_1 : i32, i32, i32
  }
  func.func @transform_5(%arg0: i32, %arg1: i32) -> (i32, i32, i32, i32) {
    %c0_i32 = arith.constant 0 : i32
    %c0_i32_0 = arith.constant 0 : i32
    %c0_i32_1 = arith.constant 0 : i32
    return %arg0, %c0_i32, %arg1, %c0_i32_0 : i32, i32, i32, i32
  }
  func.func @transform_6(%arg0: i32, %arg1: i32) -> (i32, i32, i32, i32) {
    %c0_i32 = arith.constant 0 : i32
    %c0_i32_0 = arith.constant 0 : i32
    %c0_i32_1 = arith.constant 0 : i32
    return %arg0, %c0_i32, %arg1, %c0_i32_0 : i32, i32, i32, i32
  }
  func.func @transform_7(%arg0: i32, %arg1: i32) -> (i32, i32, i32, i32) {
    %c0_i32 = arith.constant 0 : i32
    %c0_i32_0 = arith.constant 0 : i32
    %c0_i32_1 = arith.constant 0 : i32
    return %arg0, %c0_i32, %arg1, %c0_i32_0 : i32, i32, i32, i32
  }
}

</mosaic_0001>

<llo_original>
// kernel: tpu_custom_call.1
$region0: #{tpu_custom_call.1}
  #allocation0 [shape = 'u32[]', space=smem, size = 0x4, offset = 0x4, fixed_abs, tag = 'smem constant byte address 0x4 - core index']
  #allocation1 [shape = 'u32[144,128]{1,0:T(1,128)}', space=vmem, size = 0x12000, scoped, tag = 'internal scratch']
  %s0 = inlined_call_operand.hbm [shape: f32[2,8,32], index: 0, kind: input, shape index: {}]
  %s1 = inlined_call_operand.hbm [shape: f32[2,8,32], index: 1, kind: input, shape index: {}]
  %s2 = inlined_call_operand.hbm [shape: f32[2,8,32], index: 2, kind: input, shape index: {}]
  %s3 = inlined_call_operand.hbm [shape: f32[3,32,32], index: 3, kind: input, shape index: {}]
  %s4 = inlined_call_operand.hbm [shape: f32[3,4,8], index: 4, kind: input, shape index: {}]
  %s5 = inlined_call_operand.hbm [shape: f32[2,4,8,8], index: 5, kind: output, shape index: {0}]
  %s6 = inlined_call_operand.hbm [shape: f32[2,4,8,8], index: 6, kind: output, shape index: {1}]
  %s7 = inlined_call_operand.hbm [shape: f32[2,4,8,8], index: 7, kind: output, shape index: {2}]
  %8 = xla_tuple %s5, %s6, %s7
  %s9 = sld [smem:[#allocation0]]
  $region89: #{tpu_custom_call.1} parent=0
    _
  %s11 = ssub.s32 1, %s9
  %s12 = scalar_select 0, %s11, %s9
  $region1: #{tpu_custom_call.1} parent=0
    #allocation2 [shape = 'u8[8192]{0}', space=vmem, size = 0x2000, scoped, tag = 'input window, operand 0']
    #allocation3 [shape = 's32[2]{0}', space=sflag, size = 0x8, scoped, tag = 'scoped memory for tpu_custom_call.1']
    #allocation4 [shape = 's32[2]{0}', space=sflag, size = 0x8, scoped, tag = 'scoped memory for tpu_custom_call.1']
    #allocation5 [shape = 'u8[8192]{0}', space=vmem, size = 0x2000, scoped, tag = 'input window, operand 1']
    #allocation6 [shape = 's32[2]{0}', space=sflag, size = 0x8, scoped, tag = 'scoped memory for tpu_custom_call.1']
    #allocation7 [shape = 'u8[8192]{0}', space=vmem, size = 0x2000, scoped, tag = 'input window, operand 2']
    #allocation8 [shape = 'u8[49152]{0}', space=vmem, size = 0xc000, scoped, tag = 'input window, operand 3, single buffered']
    #allocation9 [shape = 's32[1]{0}', space=sflag, size = 0x4, scoped, tag = 'scoped memory for tpu_custom_call.1']
    #allocation10 [shape = 'u8[6144]{0}', space=vmem, size = 0x1800, scoped, tag = 'input window, operand 4, single buffered']
    #allocation11 [shape = 'u8[32768]{0}', space=vmem, size = 0x8000, scoped, tag = 'output window, operand 0']
    #allocation12 [shape = 'u8[32768]{0}', space=vmem, size = 0x8000, scoped, tag = 'output window, operand 1']
    #allocation13 [shape = 's32[2]{0}', space=sflag, size = 0x8, scoped, tag = 'scoped memory for tpu_custom_call.1']
    #allocation14 [shape = 'u8[32768]{0}', space=vmem, size = 0x8000, scoped, tag = 'output window, operand 2']
    %13 = vsyncpa [#allocation3], 0
    %s14 = scalar_lea.sflag [#allocation3], 1
    %15 = vsyncpa %s14, 0
    %16 = vsyncpa [#allocation6], 0
    %s17 = scalar_lea.sflag [#allocation6], 1
    %18 = vsyncpa %s17, 0
    %19 = vsyncpa [#allocation9], 0
    %20 = vsyncpa [#allocation4], 0
    %s21 = scalar_lea.sflag [#allocation4], 1
    %22 = vsyncpa %s21, 0
    %23 = vsyncpa [#allocation13], 0
    %s24 = scalar_lea.sflag [#allocation13], 1
    %25 = vsyncpa %s24, 0
    loop: start=0, step=1, limit=4
    $region2: #{tpu_custom_call.1} parent=1 // loop_pre_header
      _
    $region3: #{tpu_custom_call.1} parent=1 // loop_header
      %s27 = sphi 0, %s31
      %p28 = scmp.ge.s32.totalorder %s27, 4
      %s34 = sphi 0, %s46
      %s35 = sphi 0, %s42
      %s36 = sphi 0, %s34
      %s37 = sphi 0, %s35
      %s38 = sphi 0, %s36
      %s39 = sphi 0, %s37
      %s51 = sphi 0, %s53
      %s54 = sphi 0, %s51
      %s55 = sphi 0, %s54
      %s71 = sphi 0, %s55
      %s79 = sphi 0, %s81
      %s82 = sphi 0, %s79
      %s83 = sphi 0, %s82
      %s99 = sphi 0, %s83
      %s107 = sphi 0, %s109
      %s110 = sphi 0, %s107
      %s111 = sphi 0, %s110
      %s127 = sphi 0, %s111
      %s131 = sphi 0, %s131
      %s133 = sphi 0, %s131
      %s134 = sphi 0, %s133
      %s148 = sphi 0, %s134
      %s152 = sphi 0, %s152
      %s154 = sphi 0, %s152
      %s155 = sphi 0, %s154
      %s169 = sphi 0, %s155
      %s177 = sphi 0, %s179
      %s180 = sphi 0, %s177
      %s181 = sphi 0, %s180
      %s197 = sphi 0, %s181
      %s205 = sphi 0, %s207
      %s208 = sphi 0, %s205
      %s209 = sphi 0, %s208
      %s225 = sphi 0, %s209
      %s233 = sphi 0, %s235
      %s236 = sphi 0, %s233
      %s237 = sphi 0, %s236
      %s253 = sphi 0, %s237
    $region4: #{tpu_custom_call.1} parent=1 // loop_header_branch
      %30 = sbr.rel (%p28) target = $region8
    $region5: #{tpu_custom_call.1} parent=1 // loop_body
      %s32 = ssub.s32 %s27, 1
      %s33 = ssub.s32 %s27, 2
      %s40 = sadd.s32 1, %s35
      %p41 = scmp.ge.s32.totalorder %s40, 1
      %s42 = scalar_select %p41, 0, %s40
      %s43 = sadd.s32 1, %s34
      %s44 = scalar_select %p41, %s43, %s34
      %p45 = scmp.ge.s32.totalorder %s44, 2
      %s46 = scalar_select %p45, 0, %s44
      %s47 = ssub.s32 %s34, %s46
      %s48 = ssub.s32 %s35, %s42
      %s49 = sor.u32 %s47, %s48
      %p50 = scmp.eq.s32.totalorder %s49, 0
      %s52 = sadd.s32 %s51, 1
      %s53 = scalar_select %p50, %s51, %s52
      %p56 = pneg %p50
      %p57 = scmp.eq.s32.totalorder %s27, 1
      %p58 = por %p56, %p57
      %p59 = scmp.ne.s32.totalorder %s51, %s54
      %p60 = scmp.eq.s32.totalorder %s27, 0
      %p61 = por %p59, %p60
      %p62 = scmp.ne.s32.totalorder %s51, %s54
      %p63 = scmp.eq.s32.totalorder %s32, 1
      %p64 = por %p62, %p63
      %p65 = scmp.ne.s32.totalorder %s54, %s55
      %p66 = scmp.eq.s32.totalorder %s32, 0
      %p67 = por %p65, %p66
      %p68 = scmp.ne.s32.totalorder %s54, %s55
      %p69 = scmp.eq.s32.totalorder %s33, 1
      %p70 = por %p68, %p69
      %p72 = scmp.ne.s32.totalorder %s55, %s71
      %p73 = scmp.eq.s32.totalorder %s33, 0
      %p74 = por %p72, %p73
      %s75 = ssub.s32 %s34, %s46
      %s76 = ssub.s32 %s35, %s42
      %s77 = sor.u32 %s75, %s76
      %p78 = scmp.eq.s32.totalorder %s77, 0
      %s80 = sadd.s32 %s79, 1
      %s81 = scalar_select %p78, %s79, %s80
      %p84 = pneg %p78
      %p85 = scmp.eq.s32.totalorder %s27, 1
      %p86 = por %p84, %p85
      %p87 = scmp.ne.s32.totalorder %s79, %s82
      %p88 = scmp.eq.s32.totalorder %s27, 0
      %p89 = por %p87, %p88
      %p90 = scmp.ne.s32.totalorder %s79, %s82
      %p91 = scmp.eq.s32.totalorder %s32, 1
      %p92 = por %p90, %p91
      %p93 = scmp.ne.s32.totalorder %s82, %s83
      %p94 = scmp.eq.s32.totalorder %s32, 0
      %p95 = por %p93, %p94
      %p96 = scmp.ne.s32.totalorder %s82, %s83
      %p97 = scmp.eq.s32.totalorder %s33, 1
      %p98 = por %p96, %p97
      %p100 = scmp.ne.s32.totalorder %s83, %s99
      %p101 = scmp.eq.s32.totalorder %s33, 0
      %p102 = por %p100, %p101
      %s103 = ssub.s32 %s34, %s46
      %s104 = ssub.s32 %s35, %s42
      %s105 = sor.u32 %s103, %s104
      %p106 = scmp.eq.s32.totalorder %s105, 0
      %s108 = sadd.s32 %s107, 1
      %s109 = scalar_select %p106, %s107, %s108
      %p112 = pneg %p106
      %p113 = scmp.eq.s32.totalorder %s27, 1
      %p114 = por %p112, %p113
      %p115 = scmp.ne.s32.totalorder %s107, %s110
      %p116 = scmp.eq.s32.totalorder %s27, 0
      %p117 = por %p115, %p116
      %p118 = scmp.ne.s32.totalorder %s107, %s110
      %p119 = scmp.eq.s32.totalorder %s32, 1
      %p120 = por %p118, %p119
      %p121 = scmp.ne.s32.totalorder %s110, %s111
      %p122 = scmp.eq.s32.totalorder %s32, 0
      %p123 = por %p121, %p122
      %p124 = scmp.ne.s32.totalorder %s110, %s111
      %p125 = scmp.eq.s32.totalorder %s33, 1
      %p126 = por %p124, %p125
      %p128 = scmp.ne.s32.totalorder %s111, %s127
      %p129 = scmp.eq.s32.totalorder %s33, 0
      %p130 = por %p128, %p129
      %s132 = sadd.s32 %s131, 1
      %p135 = scmp.eq.s32.totalorder %s27, 1
      %p136 = scmp.ne.s32.totalorder %s131, %s133
      %p137 = scmp.eq.s32.totalorder %s27, 0
      %p138 = por %p136, %p137
      %p139 = scmp.ne.s32.totalorder %s131, %s133
      %p140 = scmp.eq.s32.totalorder %s32, 1
      %p141 = por %p139, %p140
      %p142 = scmp.ne.s32.totalorder %s133, %s134
      %p143 = scmp.eq.s32.totalorder %s32, 0
      %p144 = por %p142, %p143
      %p145 = scmp.ne.s32.totalorder %s133, %s134
      %p146 = scmp.eq.s32.totalorder %s33, 1
      %p147 = por %p145, %p146
      %p149 = scmp.ne.s32.totalorder %s134, %s148
      %p150 = scmp.eq.s32.totalorder %s33, 0
      %p151 = por %p149, %p150
      %s153 = sadd.s32 %s152, 1
      %p156 = scmp.eq.s32.totalorder %s27, 1
      %p157 = scmp.ne.s32.totalorder %s152, %s154
      %p158 = scmp.eq.s32.totalorder %s27, 0
      %p159 = por %p157, %p158
      %p160 = scmp.ne.s32.totalorder %s152, %s154
      %p161 = scmp.eq.s32.totalorder %s32, 1
      %p162 = por %p160, %p161
      %p163 = scmp.ne.s32.totalorder %s154, %s155
      %p164 = scmp.eq.s32.totalorder %s32, 0
      %p165 = por %p163, %p164
      %p166 = scmp.ne.s32.totalorder %s154, %s155
      %p167 = scmp.eq.s32.totalorder %s33, 1
      %p168 = por %p166, %p167
      %p170 = scmp.ne.s32.totalorder %s155, %s169
      %p171 = scmp.eq.s32.totalorder %s33, 0
      %p172 = por %p170, %p171
      %s173 = ssub.s32 %s34, %s46
      %s174 = ssub.s32 %s35, %s42
      %s175 = sor.u32 %s173, %s174
      %p176 = scmp.eq.s32.totalorder %s175, 0
      %s178 = sadd.s32 %s177, 1
      %s179 = scalar_select %p176, %s177, %s178
      %p182 = pneg %p176
      %p183 = scmp.eq.s32.totalorder %s27, 1
      %p184 = por %p182, %p183
      %p185 = scmp.ne.s32.totalorder %s177, %s180
      %p186 = scmp.eq.s32.totalorder %s27, 0
      %p187 = por %p185, %p186
      %p188 = scmp.ne.s32.totalorder %s177, %s180
      %p189 = scmp.eq.s32.totalorder %s32, 1
      %p190 = por %p188, %p189
      %p191 = scmp.ne.s32.totalorder %s180, %s181
      %p192 = scmp.eq.s32.totalorder %s32, 0
      %p193 = por %p191, %p192
      %p194 = scmp.ne.s32.totalorder %s180, %s181
      %p195 = scmp.eq.s32.totalorder %s33, 1
      %p196 = por %p194, %p195
      %p198 = scmp.ne.s32.totalorder %s181, %s197
      %p199 = scmp.eq.s32.totalorder %s33, 0
      %p200 = por %p198, %p199
      %s201 = ssub.s32 %s34, %s46
      %s202 = ssub.s32 %s35, %s42
      %s203 = sor.u32 %s201, %s202
      %p204 = scmp.eq.s32.totalorder %s203, 0
      %s206 = sadd.s32 %s205, 1
      %s207 = scalar_select %p204, %s205, %s206
      %p210 = pneg %p204
      %p211 = scmp.eq.s32.totalorder %s27, 1
      %p212 = por %p210, %p211
      %p213 = scmp.ne.s32.totalorder %s205, %s208
      %p214 = scmp.eq.s32.totalorder %s27, 0
      %p215 = por %p213, %p214
      %p216 = scmp.ne.s32.totalorder %s205, %s208
      %p217 = scmp.eq.s32.totalorder %s32, 1
      %p218 = por %p216, %p217
      %p219 = scmp.ne.s32.totalorder %s208, %s209
      %p220 = scmp.eq.s32.totalorder %s32, 0
      %p221 = por %p219, %p220
      %p222 = scmp.ne.s32.totalorder %s208, %s209
      %p223 = scmp.eq.s32.totalorder %s33, 1
      %p224 = por %p222, %p223
      %p226 = scmp.ne.s32.totalorder %s209, %s225
      %p227 = scmp.eq.s32.totalorder %s33, 0
      %p228 = por %p226, %p227
      %s229 = ssub.s32 %s34, %s46
      %s230 = ssub.s32 %s35, %s42
      %s231 = sor.u32 %s229, %s230
      %p232 = scmp.eq.s32.totalorder %s231, 0
      %s234 = sadd.s32 %s233, 1
      %s235 = scalar_select %p232, %s233, %s234
      %p238 = pneg %p232
      %p239 = scmp.eq.s32.totalorder %s27, 1
      %p240 = por %p238, %p239
      %p241 = scmp.ne.s32.totalorder %s233, %s236
      %p242 = scmp.eq.s32.totalorder %s27, 0
      %p243 = por %p241, %p242
      %p244 = scmp.ne.s32.totalorder %s233, %s236
      %p245 = scmp.eq.s32.totalorder %s32, 1
      %p246 = por %p244, %p245
      %p247 = scmp.ne.s32.totalorder %s236, %s237
      %p248 = scmp.eq.s32.totalorder %s32, 0
      %p249 = por %p247, %p248
      %p250 = scmp.ne.s32.totalorder %s236, %s237
      %p251 = scmp.eq.s32.totalorder %s33, 1
      %p252 = por %p250, %p251
      %p254 = scmp.ne.s32.totalorder %s237, %s253
      %p255 = scmp.eq.s32.totalorder %s33, 0
      %p256 = por %p254, %p255
      %p257 = scmp.le.s32.totalorder 1, %s27
      %p258 = scmp.lt.s32.totalorder %s27, 3
      %p259 = pnand %p257, %p258
      %p260 = pneg %p259
      // Predicated region
      $region9: #{tpu_custom_call.1} parent=5 // pred_check
        _
      $region10: #{tpu_custom_call.1} parent=5 // pred_check_branch
        %262 = sbr.rel (%p259) target = $region12
      $region11: #{tpu_custom_call.1} parent=5 // pred_region
        %s263 = ssub.s32 %s27, 1
        // Predicated region
        $region13: #{tpu_custom_call.1} parent=11 // pred_check
          %p264 = pneg %p144
        $region14: #{tpu_custom_call.1} parent=11 // pred_check_branch
          %266 = sbr.rel (%p264) target = $region16
        $region15: #{tpu_custom_call.1} parent=11 // pred_region
          %s268 = ssub.s32 1536, 1536
          %269 = vsyncadd [#allocation9], %s268
          %s270 = sshll.u32 [#allocation8], 4
          %s271 = int_to_ptr.vmem [resolvable:$true] %s270
          %276 = dma.hbm_to_vmem [thread:$0]  %s3, 1536, %s271, [#allocation9], 128, 128, 8
        $region16: #{tpu_custom_call.1} parent=11 // pred_fallthru
          _
        // Predicated region
        $region17: #{tpu_custom_call.1} parent=11 // pred_check
          %p277 = pneg %p165
        $region18: #{tpu_custom_call.1} parent=11 // pred_check_branch
          %279 = sbr.rel (%p277) target = $region20
        $region19: #{tpu_custom_call.1} parent=11 // pred_region
          %s281 = ssub.s32 192, 192
          %282 = vsyncadd [#allocation9], %s281
          %s283 = sshll.u32 [#allocation10], 4
          %s284 = int_to_ptr.vmem [resolvable:$true] %s283
          %289 = dma.hbm_to_vmem [thread:$0]  %s4, 192, %s284, [#allocation9], 64, 64, 4
        $region20: #{tpu_custom_call.1} parent=11 // pred_fallthru
          _
      $region12: #{tpu_custom_call.1} parent=5 // pred_fallthru
        _
      %p290 = scmp.lt.s32.totalorder %s27, 2
      // Predicated region
      $region21: #{tpu_custom_call.1} parent=5 // pred_check
        %p291 = pneg %p290
      $region22: #{tpu_custom_call.1} parent=5 // pred_check_branch
        %293 = sbr.rel (%p291) target = $region24
      $region23: #{tpu_custom_call.1} parent=5 // pred_region
        // Predicated region
        $region25: #{tpu_custom_call.1} parent=23 // pred_check
          %p294 = pneg %p61
        $region26: #{tpu_custom_call.1} parent=23 // pred_check_branch
          %296 = sbr.rel (%p294) target = $region28
        $region27: #{tpu_custom_call.1} parent=23 // pred_region
          %s297 = sand.u32 %s51, 1
          %s298 = scalar_lea.sflag [#allocation3], %s297
          %s299 = sand.u32 %s51, 1
          %s300 = smul.addr %s299, 8
          %s301 = scalar_lea.vmem [#allocation2], %s300
          %s303 = ssub.s32 128, 128
          %304 = vsyncadd %s298, %s303
          %s305 = sadd.s32 %s35, %s34
          %s306 = smul.addr %s305, 128
          %s307 = scalar_lea.hbm %s0, %s306
          %s309 = sshll.u32 %s301, 4
          %s310 = int_to_ptr.vmem [resolvable:$true] %s309
          %312 = dma.hbm_to_vmem [thread:$0]  %s307, 128, %s310, %s298
        $region28: #{tpu_custom_call.1} parent=23 // pred_fallthru
          _
        // Predicated region
        $region29: #{tpu_custom_call.1} parent=23 // pred_check
          %p313 = pneg %p89
        $region30: #{tpu_custom_call.1} parent=23 // pred_check_branch
          %315 = sbr.rel (%p313) target = $region32
        $region31: #{tpu_custom_call.1} parent=23 // pred_region
          %s316 = sand.u32 %s27, 1
          %s317 = scalar_lea.sflag [#allocation6], %s316
          %s318 = sand.u32 %s79, 1
          %s319 = smul.addr %s318, 8
          %s320 = scalar_lea.vmem [#allocation5], %s319
          %s322 = ssub.s32 128, 128
          %323 = vsyncadd %s317, %s322
          %s324 = sadd.s32 %s35, %s34
          %s325 = smul.addr %s324, 128
          %s326 = scalar_lea.hbm %s1, %s325
          %s328 = sshll.u32 %s320, 4
          %s329 = int_to_ptr.vmem [resolvable:$true] %s328
          %331 = dma.hbm_to_vmem [thread:$0]  %s326, 128, %s329, %s317
        $region32: #{tpu_custom_call.1} parent=23 // pred_fallthru
          _
        // Predicated region
        $region33: #{tpu_custom_call.1} parent=23 // pred_check
          %p332 = pneg %p117
        $region34: #{tpu_custom_call.1} parent=23 // pred_check_branch
          %334 = sbr.rel (%p332) target = $region36
        $region35: #{tpu_custom_call.1} parent=23 // pred_region
          %s335 = sand.u32 %s27, 1
          %s336 = scalar_lea.sflag [#allocation6], %s335
          %s337 = sand.u32 %s107, 1
          %s338 = smul.addr %s337, 8
          %s339 = scalar_lea.vmem [#allocation7], %s338
          %s341 = ssub.s32 128, 128
          %342 = vsyncadd %s336, %s341
          %s343 = sadd.s32 %s35, %s34
          %s344 = smul.addr %s343, 128
          %s345 = scalar_lea.hbm %s2, %s344
          %s347 = sshll.u32 %s339, 4
          %s348 = int_to_ptr.vmem [resolvable:$true] %s347
          %350 = dma.hbm_to_vmem [thread:$0]  %s345, 128, %s348, %s336
        $region36: #{tpu_custom_call.1} parent=23 // pred_fallthru
          _
      $region24: #{tpu_custom_call.1} parent=5 // pred_fallthru
        _
      %p351 = scmp.le.s32.totalorder 1, %s27
      %p352 = scmp.lt.s32.totalorder %s27, 3
      %p353 = pnand %p351, %p352
      %p354 = pneg %p353
      // Predicated region
      $region37: #{tpu_custom_call.1} parent=5 // pred_check
        _
      $region38: #{tpu_custom_call.1} parent=5 // pred_check_branch
        %356 = sbr.rel (%p353) target = $region40
      $region39: #{tpu_custom_call.1} parent=5 // pred_region
        %s357 = ssub.s32 %s27, 1
        %s358 = sand.u32 %s54, 1
        %s359 = scalar_lea.sflag [#allocation3], %s358
        %s360 = sand.u32 %s54, 1
        %s361 = smul.addr %s360, 8
        %s362 = scalar_lea.vmem [#allocation2], %s361
        // Predicated region
        $region41: #{tpu_custom_call.1} parent=39 // pred_check
          %p363 = pneg %p67
        $region42: #{tpu_custom_call.1} parent=39 // pred_check_branch
          %365 = sbr.rel (%p363) target = $region44
        $region43: #{tpu_custom_call.1} parent=39 // pred_region
          %366 = dma.done %s359, 128
        $region44: #{tpu_custom_call.1} parent=39 // pred_fallthru
          _
        %s367 = sand.u32 %s32, 1
        %s368 = scalar_lea.sflag [#allocation6], %s367
        %s369 = sand.u32 %s82, 1
        %s370 = smul.addr %s369, 8
        %s371 = scalar_lea.vmem [#allocation5], %s370
        // Predicated region
        $region45: #{tpu_custom_call.1} parent=39 // pred_check
          %p372 = pneg %p95
        $region46: #{tpu_custom_call.1} parent=39 // pred_check_branch
          %374 = sbr.rel (%p372) target = $region48
        $region47: #{tpu_custom_call.1} parent=39 // pred_region
          %375 = dma.done %s368, 128
        $region48: #{tpu_custom_call.1} parent=39 // pred_fallthru
          _
        %s376 = sand.u32 %s32, 1
        %s377 = scalar_lea.sflag [#allocation6], %s376
        %s378 = sand.u32 %s110, 1
        %s379 = smul.addr %s378, 8
        %s380 = scalar_lea.vmem [#allocation7], %s379
        // Predicated region
        $region49: #{tpu_custom_call.1} parent=39 // pred_check
          %p381 = pneg %p123
        $region50: #{tpu_custom_call.1} parent=39 // pred_check_branch
          %383 = sbr.rel (%p381) target = $region52
        $region51: #{tpu_custom_call.1} parent=39 // pred_region
          %384 = dma.done %s377, 128
        $region52: #{tpu_custom_call.1} parent=39 // pred_fallthru
          _
        // Predicated region
        $region53: #{tpu_custom_call.1} parent=39 // pred_check
          %p385 = pneg %p144
        $region54: #{tpu_custom_call.1} parent=39 // pred_check_branch
          %387 = sbr.rel (%p385) target = $region56
        $region55: #{tpu_custom_call.1} parent=39 // pred_region
          %388 = dma.done [#allocation9], 1536
        $region56: #{tpu_custom_call.1} parent=39 // pred_fallthru
          _
        // Predicated region
        $region57: #{tpu_custom_call.1} parent=39 // pred_check
          %p389 = pneg %p165
        $region58: #{tpu_custom_call.1} parent=39 // pred_check_branch
          %391 = sbr.rel (%p389) target = $region60
        $region59: #{tpu_custom_call.1} parent=39 // pred_region
          %392 = dma.done [#allocation9], 192
        $region60: #{tpu_custom_call.1} parent=39 // pred_fallthru
          _
        %s393 = sand.u32 %s54, 1
        %s394 = scalar_lea.sflag [#allocation3], %s393
        %s395 = sand.u32 %s54, 1
        %s396 = smul.addr %s395, 8
        %s397 = scalar_lea.vmem [#allocation2], %s396
        %p398 = pneg %p67
        %p399 = pneg %p64
        %s400 = sand.u32 %s32, 1
        %s401 = scalar_lea.sflag [#allocation6], %s400
        %s402 = sand.u32 %s82, 1
        %s403 = smul.addr %s402, 8
        %s404 = scalar_lea.vmem [#allocation5], %s403
        %p405 = pneg %p95
        %p406 = pneg %p92
        %s407 = sand.u32 %s32, 1
        %s408 = scalar_lea.sflag [#allocation6], %s407
        %s409 = sand.u32 %s110, 1
        %s410 = smul.addr %s409, 8
        %s411 = scalar_lea.vmem [#allocation7], %s410
        %p412 = pneg %p123
        %p413 = pneg %p120
        %p414 = pneg %p144
        %p415 = pneg %p141
        %p416 = pneg %p165
        %p417 = pneg %p162
        %p418 = pneg %p193
        %p419 = pneg %p190
        %s420 = sand.u32 %s180, 1
        %s421 = scalar_lea.sflag [#allocation4], %s420
        %s422 = sand.u32 %s180, 1
        %s423 = smul.addr %s422, 32
        %s424 = scalar_lea.vmem [#allocation11], %s423
        %p425 = pneg %p221
        %p426 = pneg %p218
        %s427 = sand.u32 %s32, 1
        %s428 = scalar_lea.sflag [#allocation13], %s427
        %s429 = sand.u32 %s208, 1
        %s430 = smul.addr %s429, 32
        %s431 = scalar_lea.vmem [#allocation12], %s430
        %p432 = pneg %p249
        %p433 = pneg %p246
        %s434 = sand.u32 %s32, 1
        %s435 = scalar_lea.sflag [#allocation13], %s434
        %s436 = sand.u32 %s236, 1
        %s437 = smul.addr %s436, 32
        %s438 = scalar_lea.vmem [#allocation14], %s437
        %v439 = vld [vmem:[%s362] sm:$0xff]
        %v440 = vld [vmem:[#allocation8] sm:$0xff]
        %v441 = vld [vmem:[#allocation8 + $0x8] sm:$0xff]
        %v442 = vld [vmem:[#allocation8 + $0x10] sm:$0xff]
        %v443 = vld [vmem:[#allocation8 + $0x18] sm:$0xff]
        %vm444 = vcmask 261120
        %v446 = vsel %vm444, %v439, 0
        %v449 = vsel %vm444, %v440, 0
        %v452 = vsel %vm444, %v441, 0
        %v455 = vsel %vm444, %v442, 0
        %v458 = vsel %vm444, %v443, 0
        %460 = vmatprep.subr.mxu0 0.0
        %461 = vmatpush1.xpose.msra.mxu0 0.0
        %462 = vmatprep.subr.mxu0 0.0
        %463 = vmatpush1.xpose.msra.mxu0 0.0
        %464 = vmatprep.subr.mxu0 0.0
        %465 = vmatpush1.xpose.msra.mxu0 0.0
        %466 = vmatprep.subr.mxu0 0.0
        %467 = vmatpush1.xpose.msra.mxu0 0.0
        %468 = vmatprep.subr.mxu0 0.0
        %469 = vmatpush1.xpose.msra.mxu0 0.0
        %470 = vmatprep.subr.mxu0 0.0
        %471 = vmatpush1.xpose.msra.mxu0 0.0
        %472 = vmatprep.subr.mxu0 0.0
        %473 = vmatpush1.xpose.msra.mxu0 0.0
        %474 = vmatprep.subr.mxu0 0.0
        %475 = vmatpush1.xpose.msra.mxu0 0.0
        %476 = vmatprep.subr.mxu0 0.0
        %477 = vmatpush1.xpose.msra.mxu0 0.0
        %478 = vmatprep.subr.mxu0 0.0
        %479 = vmatpush1.xpose.msra.mxu0 0.0
        %480 = vmatprep.subr.mxu0 0.0
        %481 = vmatpush1.xpose.msra.mxu0 0.0
        %482 = vmatprep.subr.mxu0 0.0
        %483 = vmatpush1.xpose.msra.mxu0 0.0
        %484 = vmatprep.subr.mxu0 0.0
        %485 = vmatpush1.xpose.msra.mxu0 %v458
        %486 = vmatprep.subr.mxu0 0.0
        %487 = vmatpush1.xpose.msra.mxu0 %v455
        %488 = vmatprep.subr.mxu0 0.0
        %489 = vmatpush1.xpose.msra.mxu0 %v452
        %490 = vmatprep.subr.mxu0 0.0
        %491 = vmatpush1.xpose.msra.mxu0 %v449
        %492 = vmatprep.subr.mxu0 0.0
        %493 = vmatpush2.xpose.msra.mxu0 0.0
        %494 = vmatprep.subr.mxu0 0.0
        %495 = vmatpush2.xpose.msra.mxu0 0.0
        %496 = vmatprep.subr.mxu0 0.0
        %497 = vmatpush2.xpose.msra.mxu0 0.0
        %498 = vmatprep.subr.mxu0 0.0
        %499 = vmatpush2.xpose.msra.mxu0 0.0
        %500 = vmatprep.subr.mxu0 0.0
        %501 = vmatpush2.xpose.msra.mxu0 0.0
        %502 = vmatprep.subr.mxu0 0.0
        %503 = vmatpush2.xpose.msra.mxu0 0.0
        %504 = vmatprep.subr.mxu0 0.0
        %505 = vmatpush2.xpose.msra.mxu0 0.0
        %506 = vmatprep.subr.mxu0 0.0
        %507 = vmatpush2.xpose.msra.mxu0 0.0
        %508 = vmatprep.subr.mxu0 0.0
        %509 = vmatpush2.xpose.msra.mxu0 0.0
        %510 = vmatprep.subr.mxu0 0.0
        %511 = vmatpush2.xpose.msra.mxu0 0.0
        %512 = vmatprep.subr.mxu0 0.0
        %513 = vmatpush2.xpose.msra.mxu0 0.0
        %514 = vmatprep.subr.mxu0 0.0
        %515 = vmatpush2.xpose.msra.mxu0 0.0
        %516 = vmatprep.subr.mxu0 0.0
        %517 = vmatpush2.xpose.msra.mxu0 0.0
        %518 = vmatprep.subr.mxu0 0.0
        %519 = vmatpush2.xpose.msra.mxu0 0.0
        %520 = vmatprep.subr.mxu0 0.0
        %521 = vmatpush2.xpose.msra.mxu0 0.0
        %522 = vmatprep.subr.mxu0 0.0
        %523 = vmatpush2.xpose.msra.mxu0 0.0
        %524 = vmatprep.mubr.f32.mxu0 0.0
        %525 = vmatmul.mubr.f32.gmra.mxu0 %v446
        %v526 = vpop.f32.mrf.mxu0
        %v527 = vadd.f32 0.0, %v526
        %v528 = vpop.f32.mrf.mxu0
        %529 = vdwg.mxu0
        %v530 = vld [vmem:[#allocation10] sm:$0x1]
        %v531 = vlaneseq
        %v532 = vshrl.u32 %v531, 7
        %v533 = vsub.s32 0, %v532
        %v534 = vrot.slane %v530, %v533
        %v535 = vadd.f32 %v527, %v534
        %vm536 = vcmask 64512
        %537 = vst.msk [vmem:[%s424] sm:$0xff] %vm536, %v535
        %v538 = vld [vmem:[#allocation10 + $0x1] sm:$0x1]
        %v539 = vlaneseq
        %v540 = vshrl.u32 %v539, 7
        %v541 = vsub.s32 0, %v540
        %v542 = vrot.slane %v538, %v541
        %544 = vrot.lane.b32.xlu0 %v542, 8
        %v545 = vpop.permute.xlu0 %544
        %v547 = vadd.f32 %v527, %v545
        %549 = vrot.lane.b32.xlu0 %v547, 120
        %v550 = vpop.permute.xlu0 %549
        %s552 = scalar_lea.vmem %s424, 8 [#allocation11]
        %553 = vst.msk [vmem:[%s552] sm:$0xff] %vm536, %v550
        %v554 = vld [vmem:[#allocation10 + $0x2] sm:$0x1]
        %v555 = vlaneseq
        %v556 = vshrl.u32 %v555, 7
        %v557 = vsub.s32 0, %v556
        %v558 = vrot.slane %v554, %v557
        %560 = vrot.lane.b32.xlu0 %v558, 16
        %v561 = vpop.permute.xlu0 %560
        %v563 = vadd.f32 %v527, %v561
        %565 = vrot.lane.b32.xlu0 %v563, 112
        %v566 = vpop.permute.xlu0 %565
        %s568 = scalar_lea.vmem %s424, 16 [#allocation11]
        %569 = vst.msk [vmem:[%s568] sm:$0xff] %vm536, %v566
        %v570 = vld [vmem:[#allocation10 + $0x3] sm:$0x1]
        %v571 = vlaneseq
        %v572 = vshrl.u32 %v571, 7
        %v573 = vsub.s32 0, %v572
        %v574 = vrot.slane %v570, %v573
        %576 = vrot.lane.b32.xlu0 %v574, 24
        %v577 = vpop.permute.xlu0 %576
        %v579 = vadd.f32 %v527, %v577
        %581 = vrot.lane.b32.xlu0 %v579, 104
        %v582 = vpop.permute.xlu0 %581
        %s584 = scalar_lea.vmem %s424, 24 [#allocation11]
        %585 = vst.msk [vmem:[%s584] sm:$0xff] %vm536, %v582
        %v586 = vld [vmem:[%s371] sm:$0xff]
        %s587 = scalar_lea.vmem [#allocation8], 32
        %v588 = vld [vmem:[%s587] sm:$0xff]
        %v589 = vld [vmem:[%s587 + $0x8] sm:$0xff]
        %v590 = vld [vmem:[%s587 + $0x10] sm:$0xff]
        %v591 = vld [vmem:[%s587 + $0x18] sm:$0xff]
        %v593 = vsel %vm444, %v586, 0
        %v596 = vsel %vm444, %v588, 0
        %v599 = vsel %vm444, %v589, 0
        %v602 = vsel %vm444, %v590, 0
        %v605 = vsel %vm444, %v591, 0
        %607 = vmatprep.subr.mxu0 0.0
        %608 = vmatpush1.xpose.msra.mxu0 0.0
        %609 = vmatprep.subr.mxu0 0.0
        %610 = vmatpush1.xpose.msra.mxu0 0.0
        %611 = vmatprep.subr.mxu0 0.0
        %612 = vmatpush1.xpose.msra.mxu0 0.0
        %613 = vmatprep.subr.mxu0 0.0
        %614 = vmatpush1.xpose.msra.mxu0 0.0
        %615 = vmatprep.subr.mxu0 0.0
        %616 = vmatpush1.xpose.msra.mxu0 0.0
        %617 = vmatprep.subr.mxu0 0.0
        %618 = vmatpush1.xpose.msra.mxu0 0.0
        %619 = vmatprep.subr.mxu0 0.0
        %620 = vmatpush1.xpose.msra.mxu0 0.0
        %621 = vmatprep.subr.mxu0 0.0
        %622 = vmatpush1.xpose.msra.mxu0 0.0
        %623 = vmatprep.subr.mxu0 0.0
        %624 = vmatpush1.xpose.msra.mxu0 0.0
        %625 = vmatprep.subr.mxu0 0.0
        %626 = vmatpush1.xpose.msra.mxu0 0.0
        %627 = vmatprep.subr.mxu0 0.0
        %628 = vmatpush1.xpose.msra.mxu0 0.0
        %629 = vmatprep.subr.mxu0 0.0
        %630 = vmatpush1.xpose.msra.mxu0 0.0
        %631 = vmatprep.subr.mxu0 0.0
        %632 = vmatpush1.xpose.msra.mxu0 %v605
        %633 = vmatprep.subr.mxu0 0.0
        %634 = vmatpush1.xpose.msra.mxu0 %v602
        %635 = vmatprep.subr.mxu0 0.0
        %636 = vmatpush1.xpose.msra.mxu0 %v599
        %637 = vmatprep.subr.mxu0 0.0
        %638 = vmatpush1.xpose.msra.mxu0 %v596
        %639 = vmatprep.subr.mxu0 0.0
        %640 = vmatpush2.xpose.msra.mxu0 0.0
        %641 = vmatprep.subr.mxu0 0.0
        %642 = vmatpush2.xpose.msra.mxu0 0.0
        %643 = vmatprep.subr.mxu0 0.0
        %644 = vmatpush2.xpose.msra.mxu0 0.0
        %645 = vmatprep.subr.mxu0 0.0
        %646 = vmatpush2.xpose.msra.mxu0 0.0
        %647 = vmatprep.subr.mxu0 0.0
        %648 = vmatpush2.xpose.msra.mxu0 0.0
        %649 = vmatprep.subr.mxu0 0.0
        %650 = vmatpush2.xpose.msra.mxu0 0.0
        %651 = vmatprep.subr.mxu0 0.0
        %652 = vmatpush2.xpose.msra.mxu0 0.0
        %653 = vmatprep.subr.mxu0 0.0
        %654 = vmatpush2.xpose.msra.mxu0 0.0
        %655 = vmatprep.subr.mxu0 0.0
        %656 = vmatpush2.xpose.msra.mxu0 0.0
        %657 = vmatprep.subr.mxu0 0.0
        %658 = vmatpush2.xpose.msra.mxu0 0.0
        %659 = vmatprep.subr.mxu0 0.0
        %660 = vmatpush2.xpose.msra.mxu0 0.0
        %661 = vmatprep.subr.mxu0 0.0
        %662 = vmatpush2.xpose.msra.mxu0 0.0
        %663 = vmatprep.subr.mxu0 0.0
        %664 = vmatpush2.xpose.msra.mxu0 0.0
        %665 = vmatprep.subr.mxu0 0.0
        %666 = vmatpush2.xpose.msra.mxu0 0.0
        %667 = vmatprep.subr.mxu0 0.0
        %668 = vmatpush2.xpose.msra.mxu0 0.0
        %669 = vmatprep.subr.mxu0 0.0
        %670 = vmatpush2.xpose.msra.mxu0 0.0
        %671 = vmatprep.mubr.f32.mxu0 0.0
        %672 = vmatmul.mubr.f32.gmra.mxu0 %v593
        %v673 = vpop.f32.mrf.mxu0
        %v674 = vadd.f32 0.0, %v673
        %v675 = vpop.f32.mrf.mxu0
        %676 = vdwg.mxu0
        %s677 = scalar_lea.vmem [#allocation10], 4
        %v678 = vld [vmem:[%s677] sm:$0x1]
        %v679 = vlaneseq
        %v680 = vshrl.u32 %v679, 7
        %v681 = vsub.s32 0, %v680
        %v682 = vrot.slane %v678, %v681
        %v683 = vadd.f32 %v674, %v682
        %684 = vst.msk [vmem:[%s431] sm:$0xff] %vm536, %v683
        %v685 = vld [vmem:[%s677 + $0x1] sm:$0x1]
        %v686 = vlaneseq
        %v687 = vshrl.u32 %v686, 7
        %v688 = vsub.s32 0, %v687
        %v689 = vrot.slane %v685, %v688
        %691 = vrot.lane.b32.xlu0 %v689, 8
        %v692 = vpop.permute.xlu0 %691
        %v694 = vadd.f32 %v674, %v692
        %696 = vrot.lane.b32.xlu0 %v694, 120
        %v697 = vpop.permute.xlu0 %696
        %s699 = scalar_lea.vmem %s431, 8 [#allocation12]
        %700 = vst.msk [vmem:[%s699] sm:$0xff] %vm536, %v697
        %v701 = vld [vmem:[%s677 + $0x2] sm:$0x1]
        %v702 = vlaneseq
        %v703 = vshrl.u32 %v702, 7
        %v704 = vsub.s32 0, %v703
        %v705 = vrot.slane %v701, %v704
        %707 = vrot.lane.b32.xlu0 %v705, 16
        %v708 = vpop.permute.xlu0 %707
        %v710 = vadd.f32 %v674, %v708
        %712 = vrot.lane.b32.xlu0 %v710, 112
        %v713 = vpop.permute.xlu0 %712
        %s715 = scalar_lea.vmem %s431, 16 [#allocation12]
        %716 = vst.msk [vmem:[%s715] sm:$0xff] %vm536, %v713
        %v717 = vld [vmem:[%s677 + $0x3] sm:$0x1]
        %v718 = vlaneseq
        %v719 = vshrl.u32 %v718, 7
        %v720 = vsub.s32 0, %v719
        %v721 = vrot.slane %v717, %v720
        %723 = vrot.lane.b32.xlu0 %v721, 24
        %v724 = vpop.permute.xlu0 %723
        %v726 = vadd.f32 %v674, %v724
        %728 = vrot.lane.b32.xlu0 %v726, 104
        %v729 = vpop.permute.xlu0 %728
        %s731 = scalar_lea.vmem %s431, 24 [#allocation12]
        %732 = vst.msk [vmem:[%s731] sm:$0xff] %vm536, %v729
        %v733 = vld [vmem:[%s380] sm:$0xff]
        %s734 = scalar_lea.vmem [#allocation8], 64
        %v735 = vld [vmem:[%s734] sm:$0xff]
        %v736 = vld [vmem:[%s734 + $0x8] sm:$0xff]
        %v737 = vld [vmem:[%s734 + $0x10] sm:$0xff]
        %v738 = vld [vmem:[%s734 + $0x18] sm:$0xff]
        %v740 = vsel %vm444, %v733, 0
        %v743 = vsel %vm444, %v735, 0
        %v746 = vsel %vm444, %v736, 0
        %v749 = vsel %vm444, %v737, 0
        %v752 = vsel %vm444, %v738, 0
        %754 = vmatprep.subr.mxu0 0.0
        %755 = vmatpush1.xpose.msra.mxu0 0.0
        %756 = vmatprep.subr.mxu0 0.0
        %757 = vmatpush1.xpose.msra.mxu0 0.0
        %758 = vmatprep.subr.mxu0 0.0
        %759 = vmatpush1.xpose.msra.mxu0 0.0
        %760 = vmatprep.subr.mxu0 0.0
        %761 = vmatpush1.xpose.msra.mxu0 0.0
        %762 = vmatprep.subr.mxu0 0.0
        %763 = vmatpush1.xpose.msra.mxu0 0.0
        %764 = vmatprep.subr.mxu0 0.0
        %765 = vmatpush1.xpose.msra.mxu0 0.0
        %766 = vmatprep.subr.mxu0 0.0
        %767 = vmatpush1.xpose.msra.mxu0 0.0
        %768 = vmatprep.subr.mxu0 0.0
        %769 = vmatpush1.xpose.msra.mxu0 0.0
        %770 = vmatprep.subr.mxu0 0.0
        %771 = vmatpush1.xpose.msra.mxu0 0.0
        %772 = vmatprep.subr.mxu0 0.0
        %773 = vmatpush1.xpose.msra.mxu0 0.0
        %774 = vmatprep.subr.mxu0 0.0
        %775 = vmatpush1.xpose.msra.mxu0 0.0
        %776 = vmatprep.subr.mxu0 0.0
        %777 = vmatpush1.xpose.msra.mxu0 0.0
        %778 = vmatprep.subr.mxu0 0.0
        %779 = vmatpush1.xpose.msra.mxu0 %v752
        %780 = vmatprep.subr.mxu0 0.0
        %781 = vmatpush1.xpose.msra.mxu0 %v749
        %782 = vmatprep.subr.mxu0 0.0
        %783 = vmatpush1.xpose.msra.mxu0 %v746
        %784 = vmatprep.subr.mxu0 0.0
        %785 = vmatpush1.xpose.msra.mxu0 %v743
        %786 = vmatprep.subr.mxu0 0.0
        %787 = vmatpush2.xpose.msra.mxu0 0.0
        %788 = vmatprep.subr.mxu0 0.0
        %789 = vmatpush2.xpose.msra.mxu0 0.0
        %790 = vmatprep.subr.mxu0 0.0
        %791 = vmatpush2.xpose.msra.mxu0 0.0
        %792 = vmatprep.subr.mxu0 0.0
        %793 = vmatpush2.xpose.msra.mxu0 0.0
        %794 = vmatprep.subr.mxu0 0.0
        %795 = vmatpush2.xpose.msra.mxu0 0.0
        %796 = vmatprep.subr.mxu0 0.0
        %797 = vmatpush2.xpose.msra.mxu0 0.0
        %798 = vmatprep.subr.mxu0 0.0
        %799 = vmatpush2.xpose.msra.mxu0 0.0
        %800 = vmatprep.subr.mxu0 0.0
        %801 = vmatpush2.xpose.msra.mxu0 0.0
        %802 = vmatprep.subr.mxu0 0.0
        %803 = vmatpush2.xpose.msra.mxu0 0.0
        %804 = vmatprep.subr.mxu0 0.0
        %805 = vmatpush2.xpose.msra.mxu0 0.0
        %806 = vmatprep.subr.mxu0 0.0
        %807 = vmatpush2.xpose.msra.mxu0 0.0
        %808 = vmatprep.subr.mxu0 0.0
        %809 = vmatpush2.xpose.msra.mxu0 0.0
        %810 = vmatprep.subr.mxu0 0.0
        %811 = vmatpush2.xpose.msra.mxu0 0.0
        %812 = vmatprep.subr.mxu0 0.0
        %813 = vmatpush2.xpose.msra.mxu0 0.0
        %814 = vmatprep.subr.mxu0 0.0
        %815 = vmatpush2.xpose.msra.mxu0 0.0
        %816 = vmatprep.subr.mxu0 0.0
        %817 = vmatpush2.xpose.msra.mxu0 0.0
        %818 = vmatprep.mubr.f32.mxu0 0.0
        %819 = vmatmul.mubr.f32.gmra.mxu0 %v740
        %v820 = vpop.f32.mrf.mxu0
        %v821 = vadd.f32 0.0, %v820
        %v822 = vpop.f32.mrf.mxu0
        %823 = vdwg.mxu0
        %s824 = scalar_lea.vmem [#allocation10], 8
        %v825 = vld [vmem:[%s824] sm:$0x1]
        %v826 = vlaneseq
        %v827 = vshrl.u32 %v826, 7
        %v828 = vsub.s32 0, %v827
        %v829 = vrot.slane %v825, %v828
        %v830 = vadd.f32 %v821, %v829
        %831 = vst.msk [vmem:[%s438] sm:$0xff] %vm536, %v830
        %v832 = vld [vmem:[%s824 + $0x1] sm:$0x1]
        %v833 = vlaneseq
        %v834 = vshrl.u32 %v833, 7
        %v835 = vsub.s32 0, %v834
        %v836 = vrot.slane %v832, %v835
        %838 = vrot.lane.b32.xlu0 %v836, 8
        %v839 = vpop.permute.xlu0 %838
        %v841 = vadd.f32 %v821, %v839
        %843 = vrot.lane.b32.xlu0 %v841, 120
        %v844 = vpop.permute.xlu0 %843
        %s846 = scalar_lea.vmem %s438, 8 [#allocation14]
        %847 = vst.msk [vmem:[%s846] sm:$0xff] %vm536, %v844
        %v848 = vld [vmem:[%s824 + $0x2] sm:$0x1]
        %v849 = vlaneseq
        %v850 = vshrl.u32 %v849, 7
        %v851 = vsub.s32 0, %v850
        %v852 = vrot.slane %v848, %v851
        %854 = vrot.lane.b32.xlu0 %v852, 16
        %v855 = vpop.permute.xlu0 %854
        %v857 = vadd.f32 %v821, %v855
        %859 = vrot.lane.b32.xlu0 %v857, 112
        %v860 = vpop.permute.xlu0 %859
        %s862 = scalar_lea.vmem %s438, 16 [#allocation14]
        %863 = vst.msk [vmem:[%s862] sm:$0xff] %vm536, %v860
        %v864 = vld [vmem:[%s824 + $0x3] sm:$0x1]
        %v865 = vlaneseq
        %v866 = vshrl.u32 %v865, 7
        %v867 = vsub.s32 0, %v866
        %v868 = vrot.slane %v864, %v867
        %870 = vrot.lane.b32.xlu0 %v868, 24
        %v871 = vpop.permute.xlu0 %870
        %v873 = vadd.f32 %v821, %v871
        %875 = vrot.lane.b32.xlu0 %v873, 104
        %v876 = vpop.permute.xlu0 %875
        %s878 = scalar_lea.vmem %s438, 24 [#allocation14]
        %879 = vst.msk [vmem:[%s878] sm:$0xff] %vm536, %v876
        %s880 = sand.u32 %s180, 1
        %s881 = scalar_lea.sflag [#allocation4], %s880
        %s882 = sand.u32 %s180, 1
        %s883 = smul.addr %s882, 32
        %s884 = scalar_lea.vmem [#allocation11], %s883
        %s885 = sand.u32 %s32, 1
        %s886 = scalar_lea.sflag [#allocation13], %s885
        %s887 = sand.u32 %s208, 1
        %s888 = smul.addr %s887, 32
        %s889 = scalar_lea.vmem [#allocation12], %s888
        %s890 = sand.u32 %s32, 1
        %s891 = scalar_lea.sflag [#allocation13], %s890
        %s892 = sand.u32 %s236, 1
        %s893 = smul.addr %s892, 32
        %s894 = scalar_lea.vmem [#allocation14], %s893
        // Predicated region
        $region61: #{tpu_custom_call.1} parent=39 // pred_check
          %p895 = pneg %p190
        $region62: #{tpu_custom_call.1} parent=39 // pred_check_branch
          %897 = sbr.rel (%p895) target = $region64
        $region63: #{tpu_custom_call.1} parent=39 // pred_region
          %s899 = ssub.s32 512, 512
          %900 = vsyncadd %s881, %s899
          %s901 = smul.addr %s36, 4
          %s902 = sadd.s32 %s37, %s901
          %s903 = smul.addr %s902, 128
          %s904 = scalar_lea.hbm %s5, %s903
          %s905 = sshll.u32 %s884, 4
          %s906 = int_to_ptr.vmem [resolvable:$true] %s905
          %911 = dma.vmem_to_hbm [thread:$0]  %s906, 512, %s904, %s881, 128, 128, 8
        $region64: #{tpu_custom_call.1} parent=39 // pred_fallthru
          _
        // Predicated region
        $region65: #{tpu_custom_call.1} parent=39 // pred_check
          %p912 = pneg %p218
        $region66: #{tpu_custom_call.1} parent=39 // pred_check_branch
          %914 = sbr.rel (%p912) target = $region68
        $region67: #{tpu_custom_call.1} parent=39 // pred_region
          %s916 = ssub.s32 512, 512
          %917 = vsyncadd %s886, %s916
          %s918 = smul.addr %s36, 4
          %s919 = sadd.s32 %s37, %s918
          %s920 = smul.addr %s919, 128
          %s921 = scalar_lea.hbm %s6, %s920
          %s922 = sshll.u32 %s889, 4
          %s923 = int_to_ptr.vmem [resolvable:$true] %s922
          %928 = dma.vmem_to_hbm [thread:$0]  %s923, 512, %s921, %s886, 128, 128, 8
        $region68: #{tpu_custom_call.1} parent=39 // pred_fallthru
          _
        // Predicated region
        $region69: #{tpu_custom_call.1} parent=39 // pred_check
          %p929 = pneg %p246
        $region70: #{tpu_custom_call.1} parent=39 // pred_check_branch
          %931 = sbr.rel (%p929) target = $region72
        $region71: #{tpu_custom_call.1} parent=39 // pred_region
          %s933 = ssub.s32 512, 512
          %934 = vsyncadd %s891, %s933
          %s935 = smul.addr %s36, 4
          %s936 = sadd.s32 %s37, %s935
          %s937 = smul.addr %s936, 128
          %s938 = scalar_lea.hbm %s7, %s937
          %s939 = sshll.u32 %s894, 4
          %s940 = int_to_ptr.vmem [resolvable:$true] %s939
          %945 = dma.vmem_to_hbm [thread:$0]  %s940, 512, %s938, %s891, 128, 128, 8
        $region72: #{tpu_custom_call.1} parent=39 // pred_fallthru
          _
      $region40: #{tpu_custom_call.1} parent=5 // pred_fallthru
        _
      %p946 = scmp.le.s32.totalorder 2, %s27
      // Predicated region
      $region73: #{tpu_custom_call.1} parent=5 // pred_check
        %p947 = pneg %p946
      $region74: #{tpu_custom_call.1} parent=5 // pred_check_branch
        %949 = sbr.rel (%p947) target = $region76
      $region75: #{tpu_custom_call.1} parent=5 // pred_region
        %s950 = ssub.s32 %s27, 2
        // Predicated region
        $region77: #{tpu_custom_call.1} parent=75 // pred_check
          %p951 = pneg %p196
        $region78: #{tpu_custom_call.1} parent=75 // pred_check_branch
          %953 = sbr.rel (%p951) target = $region80
        $region79: #{tpu_custom_call.1} parent=75 // pred_region
          %s954 = sand.u32 %s181, 1
          %s955 = scalar_lea.sflag [#allocation4], %s954
          %s956 = sand.u32 %s181, 1
          %s957 = smul.addr %s956, 32
          %s958 = scalar_lea.vmem [#allocation11], %s957
          %959 = dma.done %s955, 512
        $region80: #{tpu_custom_call.1} parent=75 // pred_fallthru
          _
        // Predicated region
        $region81: #{tpu_custom_call.1} parent=75 // pred_check
          %p960 = pneg %p224
        $region82: #{tpu_custom_call.1} parent=75 // pred_check_branch
          %962 = sbr.rel (%p960) target = $region84
        $region83: #{tpu_custom_call.1} parent=75 // pred_region
          %s963 = sand.u32 %s33, 1
          %s964 = scalar_lea.sflag [#allocation13], %s963
          %s965 = sand.u32 %s209, 1
          %s966 = smul.addr %s965, 32
          %s967 = scalar_lea.vmem [#allocation12], %s966
          %968 = dma.done %s964, 512
        $region84: #{tpu_custom_call.1} parent=75 // pred_fallthru
          _
        // Predicated region
        $region85: #{tpu_custom_call.1} parent=75 // pred_check
          %p969 = pneg %p252
        $region86: #{tpu_custom_call.1} parent=75 // pred_check_branch
          %971 = sbr.rel (%p969) target = $region88
        $region87: #{tpu_custom_call.1} parent=75 // pred_region
          %s972 = sand.u32 %s33, 1
          %s973 = scalar_lea.sflag [#allocation13], %s972
          %s974 = sand.u32 %s237, 1
          %s975 = smul.addr %s974, 32
          %s976 = scalar_lea.vmem [#allocation14], %s975
          %977 = dma.done %s973, 512
        $region88: #{tpu_custom_call.1} parent=75 // pred_fallthru
          _
      $region76: #{tpu_custom_call.1} parent=5 // pred_fallthru
        _
    $region6: #{tpu_custom_call.1} parent=1 // loop_footer
      %s31 = sadd.s32 1, %s27
    $region7: #{tpu_custom_call.1} parent=1 // loop_footer_branch
      %26 = sbr.rel target = $region3
    $region8: #{tpu_custom_call.1} parent=1 // loop_exit
      _
    %978 = vsyncpa [#allocation3], 1
    %s979 = scalar_lea.sflag [#allocation3], 1
    %980 = vsyncpa %s979, 1
    %981 = vsyncpa [#allocation6], 1
    %s982 = scalar_lea.sflag [#allocation6], 1
    %983 = vsyncpa %s982, 1
    %984 = vsyncpa [#allocation9], 1
    %985 = vsyncpa [#allocation4], 1
    %s986 = scalar_lea.sflag [#allocation4], 1
    %987 = vsyncpa %s986, 1
    %988 = vsyncpa [#allocation13], 1
    %s989 = scalar_lea.sflag [#allocation13], 1
    %990 = vsyncpa %s989, 1

</llo_original>
